<compile_context>
chip_gen: v6e
topology: v6e:2x2x1
jax: 0.10.0
libtpu: 0.0.40
codegen_flags: <defaults>
</compile_context>

<pallas_src>
import jax
import jax.numpy as jnp
from jax.experimental import pallas as pl
from jax.experimental.pallas import tpu as pltpu


def _banded_weights(w_oihw, W):
    """OIHW (Cout, Cin, 3, 3) -> (3, Cin*W, Cout*W) block-banded matrices.

    B[ky][ci*W + w_in, co*W + w_out] = w[co, ci, ky, (w_in - w_out) + 1]
    when |w_in - w_out| <= 1, else 0.  The zero band reproduces the horizontal
    'SAME' zero padding, so the kernel needs no masking along W.  (One-time
    parameter prep in the wrapper, not kernel work.)
    """
    Cout, Cin = w_oihw.shape[0], w_oihw.shape[1]
    d = jnp.arange(W)[:, None] - jnp.arange(W)[None, :]        # (w_in, w_out)
    valid = (jnp.abs(d) <= 1)[:, :, None, None]
    kx = jnp.clip(d + 1, 0, 2)                                 # (W, W) tap index
    mats = []
    for ky in range(3):
        w_k = jnp.transpose(w_oihw[:, :, ky, :], (2, 1, 0))    # (kx, Cin, Cout)
        m4 = jnp.where(valid, w_k[kx], 0.0)                    # (w_in, w_out, ci, co)
        mats.append(jnp.transpose(m4, (2, 0, 3, 1)).reshape(Cin * W, Cout * W))
    return jnp.stack(mats, axis=0)                             # (3, Cin*W, Cout*W)


def _conv_block_kernel(x_ref, wb1_ref, b1_ref, wb2_ref, b2_ref, o_ref):
    # x_ref  : (N, Cin, H, W)       NCHW input (no padding anywhere)
    # wb1_ref: (3, Cin, W, Cout*W)  conv1 banded weights, one (W, Cout*W) per (ky, ci)
    # b1_ref : (1, Cout*W)          conv1 bias, lane index co*W + w
    # wb2_ref: (3, Cout*W, Cout*W)  conv2 banded weights, one per ky
    # b2_ref : (1, Cout*W)
    # o_ref  : (N, Cout, H, W)      NCHW output
    N, Cin, H, W = x_ref.shape
    Cout = o_ref.shape[1]
    R = N * H

    x = x_ref[...].astype(jnp.float32)
    # Per-channel (R, W) planes: middle-dim slice + leading-dim collapse only
    # (no lane relayout); the channel packing itself happens inside the MXU.
    planes = [x[:, ci, :, :].reshape(R, W) for ci in range(Cin)]

    # Vertical-halo row masks: built ONCE, reused by both convs.  h == 0 rows
    # (resp. h == H-1) are exactly the rows that wrap across an image edge.
    h_idx = jax.lax.broadcasted_iota(jnp.int32, (N, H, 1), 1).reshape(R, 1)
    m_up = (h_idx != 0).astype(jnp.float32)        # valid row h-1 exists
    m_dn = (h_idx != H - 1).astype(jnp.float32)    # valid row h+1 exists

    def _finish(t_up, t_mid, t_dn, bias_row):
        # roll-after-matmul: roll_rows(a) @ B == roll_rows(a @ B).  The float
        # masks zero the wrapped rows (vertical 'SAME' padding + image isolation).
        return (pltpu.roll(t_up, 1, 0) * m_up       # ky = 0 needs row h-1
                + t_mid                             # ky = 1
                + pltpu.roll(t_dn, R - 1, 0) * m_dn # ky = 2 needs row h+1
                + bias_row)                         # lane-dense bias add

    # ---- conv1: per-(ky, ci) banded matmuls (packing folded into the MXU) ----
    t1 = []
    for ky in range(3):
        t = jnp.dot(planes[0], wb1_ref[ky, 0], preferred_element_type=jnp.float32)
        for ci in range(1, Cin):
            t = t + jnp.dot(planes[ci], wb1_ref[ky, ci],
                            preferred_element_type=jnp.float32)
        t1.append(t)
    y1 = _finish(t1[0], t1[1], t1[2], b1_ref[...])   # (R, Cout*W), lane = co*W + w

    # ---- conv2: fully lane-dense banded matmuls (K = Nout = Cout*W = 128) ----
    t2 = [jnp.dot(y1, wb2_ref[ky], preferred_element_type=jnp.float32)
          for ky in range(3)]
    y2 = _finish(t2[0], t2[1], t2[2], b2_ref[...])   # (R, Cout*W)

    # ---- unpack the packed result straight into the NCHW output --------------
    for co in range(Cout):
        o_ref[:, co:co + 1, :, :] = (
            y2[:, co * W:(co + 1) * W].reshape(N, 1, H, W).astype(o_ref.dtype))


def conv_block_forward(x_nchw, w1_oihw, b1, w2_oihw, b2):
    """conv_block forward.  x: (N, Cin, H, W) NCHW; weights OIHW; returns NCHW."""
    N, Cin, H, W = x_nchw.shape
    Cout = w1_oihw.shape[0]
    L = Cout * W

    # One-time parameter prep (module parameters, not per-step activation work).
    wb1 = _banded_weights(w1_oihw, W).reshape(3, Cin, W, L).astype(jnp.float32)
    wb2 = _banded_weights(w2_oihw, W).astype(jnp.float32)        # (3, L, L)
    b1_row = jnp.repeat(b1, W).reshape(1, L).astype(jnp.float32)  # lane = co*W + w
    b2_row = jnp.repeat(b2, W).reshape(1, L).astype(jnp.float32)

    return pl.pallas_call(
        _conv_block_kernel,
        out_shape=jax.ShapeDtypeStruct((N, Cout, H, W), x_nchw.dtype),
        grid_spec=pltpu.PrefetchScalarGridSpec(
            num_scalar_prefetch=0,
            grid=(1,),  # batch folded into the matmul M dim: one grid step
            in_specs=[
                pl.BlockSpec((N, Cin, H, W), lambda i: (0, 0, 0, 0)),
                pl.BlockSpec((3, Cin, W, L), lambda i: (0, 0, 0, 0)),
                pl.BlockSpec((1, L), lambda i: (0, 0)),
                pl.BlockSpec((3, L, L), lambda i: (0, 0, 0)),
                pl.BlockSpec((1, L), lambda i: (0, 0)),
            ],
            out_specs=pl.BlockSpec((N, Cout, H, W), lambda i: (0, 0, 0, 0)),
        ),
        compiler_params=pltpu.CompilerParams(
            dimension_semantics=("arbitrary",),
        ),
    )(x_nchw, wb1, b1_row, wb2, b2_row)


def _reference(x, w1, b1, w2, b2):
    dn = jax.lax.conv_dimension_numbers(x.shape, w1.shape, ("NCHW", "OIHW", "NCHW"))
    y = jax.lax.conv_general_dilated(x, w1, (1, 1), "SAME", dimension_numbers=dn)
    y = y + b1[None, :, None, None]
    dn2 = jax.lax.conv_dimension_numbers(y.shape, w2.shape, ("NCHW", "OIHW", "NCHW"))
    y = jax.lax.conv_general_dilated(y, w2, (1, 1), "SAME", dimension_numbers=dn2)
    y = y + b2[None, :, None, None]
    return y


if __name__ == "__main__":
    N, CH_IN, CH_OUT, H, W = 2, 4, 8, 16, 16  # W * CH_OUT == 128 -> lane-dense

    key = jax.random.PRNGKey(0)
    kx, k1w, k1b, k2w, k2b = jax.random.split(key, 5)

    x = jax.random.normal(kx, (N, CH_IN, H, W), dtype=jnp.float32)
    # PyTorch Conv2d parameter shapes: OIHW weights + (Cout,) bias.
    w1 = 0.1 * jax.random.normal(k1w, (CH_OUT, CH_IN, 3, 3), dtype=jnp.float32)
    b1 = 0.1 * jax.random.normal(k1b, (CH_OUT,), dtype=jnp.float32)
    w2 = 0.1 * jax.random.normal(k2w, (CH_OUT, CH_OUT, 3, 3), dtype=jnp.float32)
    b2 = 0.1 * jax.random.normal(k2b, (CH_OUT,), dtype=jnp.float32)

    out = jax.block_until_ready(conv_block_forward(x, w1, b1, w2, b2))
    ref = jax.block_until_ready(_reference(x, w1, b1, w2, b2))

    assert out.shape == (N, CH_OUT, H, W), out.shape
    max_err = float(jnp.max(jnp.abs(out - ref)))
    assert jnp.allclose(out, ref, atol=1e-4, rtol=1e-4), max_err

    print("KERNEL_OK")
</pallas_src>

<mosaic_0001>
module attributes {stable_mosaic.version = 11 : i64} {
  func.func @_conv_block_kernel(%arg0: i32, %arg1: memref<2x4x16x16xf32, #tpu.memory_space<vmem>>, %arg2: memref<3x4x16x128xf32, #tpu.memory_space<vmem>>, %arg3: memref<1x128xf32, #tpu.memory_space<vmem>>, %arg4: memref<3x128x128xf32, #tpu.memory_space<vmem>>, %arg5: memref<1x128xf32, #tpu.memory_space<vmem>>, %arg6: memref<2x8x16x16xf32, #tpu.memory_space<vmem>>) attributes {dimension_semantics = [#tpu.dimension_semantics<arbitrary>], iteration_bounds = array<i64: 1>, scalar_prefetch = 0 : i64, scratch_operands = 0 : i64, tpu.core_type = #tpu.core_type<tc>, window_params = [{pipeline_mode = #tpu.pipeline_mode<synchronous>, transform_indices = @transform_0, window_bounds = array<i64: 2, 4, 16, 16>}, {pipeline_mode = #tpu.pipeline_mode<synchronous>, transform_indices = @transform_1, window_bounds = array<i64: 3, 4, 16, 128>}, {pipeline_mode = #tpu.pipeline_mode<synchronous>, transform_indices = @transform_2, window_bounds = array<i64: 1, 128>}, {pipeline_mode = #tpu.pipeline_mode<synchronous>, transform_indices = @transform_3, window_bounds = array<i64: 3, 128, 128>}, {pipeline_mode = #tpu.pipeline_mode<synchronous>, transform_indices = @transform_4, window_bounds = array<i64: 1, 128>}, {pipeline_mode = #tpu.pipeline_mode<synchronous>, transform_indices = @transform_5, window_bounds = array<i64: 2, 8, 16, 16>}]} {
    %c0 = arith.constant 0 : index
    %c0_0 = arith.constant 0 : index
    %c0_1 = arith.constant 0 : index
    %c0_2 = arith.constant 0 : index
    %0 = vector.load %arg1[%c0, %c0_0, %c0_1, %c0_2] : memref<2x4x16x16xf32, #tpu.memory_space<vmem>>, vector<2x4x16x16xf32>
    %1 = vector.extract_strided_slice %0 {offsets = [0, 0, 0, 0], sizes = [2, 1, 16, 16], strides = [1, 1, 1, 1]} : vector<2x4x16x16xf32> to vector<2x1x16x16xf32>
    %2 = vector.shape_cast %1 : vector<2x1x16x16xf32> to vector<2x16x16xf32>
    %3 = vector.shape_cast %2 : vector<2x16x16xf32> to vector<32x16xf32>
    %4 = vector.extract_strided_slice %0 {offsets = [0, 1, 0, 0], sizes = [2, 1, 16, 16], strides = [1, 1, 1, 1]} : vector<2x4x16x16xf32> to vector<2x1x16x16xf32>
    %5 = vector.shape_cast %4 : vector<2x1x16x16xf32> to vector<2x16x16xf32>
    %6 = vector.shape_cast %5 : vector<2x16x16xf32> to vector<32x16xf32>
    %7 = vector.extract_strided_slice %0 {offsets = [0, 2, 0, 0], sizes = [2, 1, 16, 16], strides = [1, 1, 1, 1]} : vector<2x4x16x16xf32> to vector<2x1x16x16xf32>
    %8 = vector.shape_cast %7 : vector<2x1x16x16xf32> to vector<2x16x16xf32>
    %9 = vector.shape_cast %8 : vector<2x16x16xf32> to vector<32x16xf32>
    %10 = vector.extract_strided_slice %0 {offsets = [0, 3, 0, 0], sizes = [2, 1, 16, 16], strides = [1, 1, 1, 1]} : vector<2x4x16x16xf32> to vector<2x1x16x16xf32>
    %11 = vector.shape_cast %10 : vector<2x1x16x16xf32> to vector<2x16x16xf32>
    %12 = vector.shape_cast %11 : vector<2x16x16xf32> to vector<32x16xf32>
    %13 = tpu.iota {dimensions = array<i32: 1>} : vector<2x16x1xi32>
    %14 = vector.shape_cast %13 : vector<2x16x1xi32> to vector<32x1xi32>
    %c0_i32 = arith.constant 0 : i32
    %15 = vector.broadcast %c0_i32 : i32 to vector<32x1xi32>
    %16 = arith.cmpi ne, %14, %15 : vector<32x1xi32>
    %17 = arith.extui %16 : vector<32x1xi1> to vector<32x1xi32>
    %18 = arith.sitofp %17 : vector<32x1xi32> to vector<32x1xf32>
    %c15_i32 = arith.constant 15 : i32
    %19 = vector.broadcast %c15_i32 : i32 to vector<32x1xi32>
    %20 = arith.cmpi ne, %14, %19 : vector<32x1xi32>
    %21 = arith.extui %20 : vector<32x1xi1> to vector<32x1xi32>
    %22 = arith.sitofp %21 : vector<32x1xi32> to vector<32x1xf32>
    %c0_3 = arith.constant 0 : index
    %c0_4 = arith.constant 0 : index
    %c0_5 = arith.constant 0 : index
    %c0_6 = arith.constant 0 : index
    %23 = vector.load %arg2[%c0_3, %c0_4, %c0_5, %c0_6] : memref<3x4x16x128xf32, #tpu.memory_space<vmem>>, vector<1x1x16x128xf32>
    %24 = vector.shape_cast %23 : vector<1x1x16x128xf32> to vector<16x128xf32>
    %cst = arith.constant dense<0.000000e+00> : vector<32x128xf32>
    %25 = tpu.matmul %3, %24, %cst {dimension_numbers = #tpu.dot_dimension_numbers<[1], [0], [0], [1], [0, 0, 1, 1], [], []>} : vector<32x16xf32>, vector<16x128xf32>, vector<32x128xf32> -> vector<32x128xf32>
    %c0_7 = arith.constant 0 : index
    %c1 = arith.constant 1 : index
    %c0_8 = arith.constant 0 : index
    %c0_9 = arith.constant 0 : index
    %26 = vector.load %arg2[%c0_7, %c1, %c0_8, %c0_9] : memref<3x4x16x128xf32, #tpu.memory_space<vmem>>, vector<1x1x16x128xf32>
    %27 = vector.shape_cast %26 : vector<1x1x16x128xf32> to vector<16x128xf32>
    %cst_10 = arith.constant dense<0.000000e+00> : vector<32x128xf32>
    %28 = tpu.matmul %6, %27, %cst_10 {dimension_numbers = #tpu.dot_dimension_numbers<[1], [0], [0], [1], [0, 0, 1, 1], [], []>} : vector<32x16xf32>, vector<16x128xf32>, vector<32x128xf32> -> vector<32x128xf32>
    %29 = arith.addf %25, %28 : vector<32x128xf32>
    %c0_11 = arith.constant 0 : index
    %c2 = arith.constant 2 : index
    %c0_12 = arith.constant 0 : index
    %c0_13 = arith.constant 0 : index
    %30 = vector.load %arg2[%c0_11, %c2, %c0_12, %c0_13] : memref<3x4x16x128xf32, #tpu.memory_space<vmem>>, vector<1x1x16x128xf32>
    %31 = vector.shape_cast %30 : vector<1x1x16x128xf32> to vector<16x128xf32>
    %cst_14 = arith.constant dense<0.000000e+00> : vector<32x128xf32>
    %32 = tpu.matmul %9, %31, %cst_14 {dimension_numbers = #tpu.dot_dimension_numbers<[1], [0], [0], [1], [0, 0, 1, 1], [], []>} : vector<32x16xf32>, vector<16x128xf32>, vector<32x128xf32> -> vector<32x128xf32>
    %33 = arith.addf %29, %32 : vector<32x128xf32>
    %c0_15 = arith.constant 0 : index
    %c3 = arith.constant 3 : index
    %c0_16 = arith.constant 0 : index
    %c0_17 = arith.constant 0 : index
    %34 = vector.load %arg2[%c0_15, %c3, %c0_16, %c0_17] : memref<3x4x16x128xf32, #tpu.memory_space<vmem>>, vector<1x1x16x128xf32>
    %35 = vector.shape_cast %34 : vector<1x1x16x128xf32> to vector<16x128xf32>
    %cst_18 = arith.constant dense<0.000000e+00> : vector<32x128xf32>
    %36 = tpu.matmul %12, %35, %cst_18 {dimension_numbers = #tpu.dot_dimension_numbers<[1], [0], [0], [1], [0, 0, 1, 1], [], []>} : vector<32x16xf32>, vector<16x128xf32>, vector<32x128xf32> -> vector<32x128xf32>
    %37 = arith.addf %33, %36 : vector<32x128xf32>
    %c1_19 = arith.constant 1 : index
    %c0_20 = arith.constant 0 : index
    %c0_21 = arith.constant 0 : index
    %c0_22 = arith.constant 0 : index
    %38 = vector.load %arg2[%c1_19, %c0_20, %c0_21, %c0_22] : memref<3x4x16x128xf32, #tpu.memory_space<vmem>>, vector<1x1x16x128xf32>
    %39 = vector.shape_cast %38 : vector<1x1x16x128xf32> to vector<16x128xf32>
    %cst_23 = arith.constant dense<0.000000e+00> : vector<32x128xf32>
    %40 = tpu.matmul %3, %39, %cst_23 {dimension_numbers = #tpu.dot_dimension_numbers<[1], [0], [0], [1], [0, 0, 1, 1], [], []>} : vector<32x16xf32>, vector<16x128xf32>, vector<32x128xf32> -> vector<32x128xf32>
    %c1_24 = arith.constant 1 : index
    %c1_25 = arith.constant 1 : index
    %c0_26 = arith.constant 0 : index
    %c0_27 = arith.constant 0 : index
    %41 = vector.load %arg2[%c1_24, %c1_25, %c0_26, %c0_27] : memref<3x4x16x128xf32, #tpu.memory_space<vmem>>, vector<1x1x16x128xf32>
    %42 = vector.shape_cast %41 : vector<1x1x16x128xf32> to vector<16x128xf32>
    %cst_28 = arith.constant dense<0.000000e+00> : vector<32x128xf32>
    %43 = tpu.matmul %6, %42, %cst_28 {dimension_numbers = #tpu.dot_dimension_numbers<[1], [0], [0], [1], [0, 0, 1, 1], [], []>} : vector<32x16xf32>, vector<16x128xf32>, vector<32x128xf32> -> vector<32x128xf32>
    %44 = arith.addf %40, %43 : vector<32x128xf32>
    %c1_29 = arith.constant 1 : index
    %c2_30 = arith.constant 2 : index
    %c0_31 = arith.constant 0 : index
    %c0_32 = arith.constant 0 : index
    %45 = vector.load %arg2[%c1_29, %c2_30, %c0_31, %c0_32] : memref<3x4x16x128xf32, #tpu.memory_space<vmem>>, vector<1x1x16x128xf32>
    %46 = vector.shape_cast %45 : vector<1x1x16x128xf32> to vector<16x128xf32>
    %cst_33 = arith.constant dense<0.000000e+00> : vector<32x128xf32>
    %47 = tpu.matmul %9, %46, %cst_33 {dimension_numbers = #tpu.dot_dimension_numbers<[1], [0], [0], [1], [0, 0, 1, 1], [], []>} : vector<32x16xf32>, vector<16x128xf32>, vector<32x128xf32> -> vector<32x128xf32>
    %48 = arith.addf %44, %47 : vector<32x128xf32>
    %c1_34 = arith.constant 1 : index
    %c3_35 = arith.constant 3 : index
    %c0_36 = arith.constant 0 : index
    %c0_37 = arith.constant 0 : index
    %49 = vector.load %arg2[%c1_34, %c3_35, %c0_36, %c0_37] : memref<3x4x16x128xf32, #tpu.memory_space<vmem>>, vector<1x1x16x128xf32>
    %50 = vector.shape_cast %49 : vector<1x1x16x128xf32> to vector<16x128xf32>
    %cst_38 = arith.constant dense<0.000000e+00> : vector<32x128xf32>
    %51 = tpu.matmul %12, %50, %cst_38 {dimension_numbers = #tpu.dot_dimension_numbers<[1], [0], [0], [1], [0, 0, 1, 1], [], []>} : vector<32x16xf32>, vector<16x128xf32>, vector<32x128xf32> -> vector<32x128xf32>
    %52 = arith.addf %48, %51 : vector<32x128xf32>
    %c2_39 = arith.constant 2 : index
    %c0_40 = arith.constant 0 : index
    %c0_41 = arith.constant 0 : index
    %c0_42 = arith.constant 0 : index
    %53 = vector.load %arg2[%c2_39, %c0_40, %c0_41, %c0_42] : memref<3x4x16x128xf32, #tpu.memory_space<vmem>>, vector<1x1x16x128xf32>
    %54 = vector.shape_cast %53 : vector<1x1x16x128xf32> to vector<16x128xf32>
    %cst_43 = arith.constant dense<0.000000e+00> : vector<32x128xf32>
    %55 = tpu.matmul %3, %54, %cst_43 {dimension_numbers = #tpu.dot_dimension_numbers<[1], [0], [0], [1], [0, 0, 1, 1], [], []>} : vector<32x16xf32>, vector<16x128xf32>, vector<32x128xf32> -> vector<32x128xf32>
    %c2_44 = arith.constant 2 : index
    %c1_45 = arith.constant 1 : index
    %c0_46 = arith.constant 0 : index
    %c0_47 = arith.constant 0 : index
    %56 = vector.load %arg2[%c2_44, %c1_45, %c0_46, %c0_47] : memref<3x4x16x128xf32, #tpu.memory_space<vmem>>, vector<1x1x16x128xf32>
    %57 = vector.shape_cast %56 : vector<1x1x16x128xf32> to vector<16x128xf32>
    %cst_48 = arith.constant dense<0.000000e+00> : vector<32x128xf32>
    %58 = tpu.matmul %6, %57, %cst_48 {dimension_numbers = #tpu.dot_dimension_numbers<[1], [0], [0], [1], [0, 0, 1, 1], [], []>} : vector<32x16xf32>, vector<16x128xf32>, vector<32x128xf32> -> vector<32x128xf32>
    %59 = arith.addf %55, %58 : vector<32x128xf32>
    %c2_49 = arith.constant 2 : index
    %c2_50 = arith.constant 2 : index
    %c0_51 = arith.constant 0 : index
    %c0_52 = arith.constant 0 : index
    %60 = vector.load %arg2[%c2_49, %c2_50, %c0_51, %c0_52] : memref<3x4x16x128xf32, #tpu.memory_space<vmem>>, vector<1x1x16x128xf32>
    %61 = vector.shape_cast %60 : vector<1x1x16x128xf32> to vector<16x128xf32>
    %cst_53 = arith.constant dense<0.000000e+00> : vector<32x128xf32>
    %62 = tpu.matmul %9, %61, %cst_53 {dimension_numbers = #tpu.dot_dimension_numbers<[1], [0], [0], [1], [0, 0, 1, 1], [], []>} : vector<32x16xf32>, vector<16x128xf32>, vector<32x128xf32> -> vector<32x128xf32>
    %63 = arith.addf %59, %62 : vector<32x128xf32>
    %c2_54 = arith.constant 2 : index
    %c3_55 = arith.constant 3 : index
    %c0_56 = arith.constant 0 : index
    %c0_57 = arith.constant 0 : index
    %64 = vector.load %arg2[%c2_54, %c3_55, %c0_56, %c0_57] : memref<3x4x16x128xf32, #tpu.memory_space<vmem>>, vector<1x1x16x128xf32>
    %65 = vector.shape_cast %64 : vector<1x1x16x128xf32> to vector<16x128xf32>
    %cst_58 = arith.constant dense<0.000000e+00> : vector<32x128xf32>
    %66 = tpu.matmul %12, %65, %cst_58 {dimension_numbers = #tpu.dot_dimension_numbers<[1], [0], [0], [1], [0, 0, 1, 1], [], []>} : vector<32x16xf32>, vector<16x128xf32>, vector<32x128xf32> -> vector<32x128xf32>
    %67 = arith.addf %63, %66 : vector<32x128xf32>
    %c0_59 = arith.constant 0 : index
    %c0_60 = arith.constant 0 : index
    %68 = vector.load %arg3[%c0_59, %c0_60] : memref<1x128xf32, #tpu.memory_space<vmem>>, vector<1x128xf32>
    %c1_i32 = arith.constant 1 : i32
    %69 = tpu.dynamic_rotate %37 by %c1_i32 dim 0 : vector<32x128xf32>, i32 -> vector<32x128xf32>
    %70 = vector.broadcast %18 : vector<32x1xf32> to vector<32x128xf32>
    %71 = arith.mulf %69, %70 : vector<32x128xf32>
    %72 = arith.addf %71, %52 : vector<32x128xf32>
    %c31_i32 = arith.constant 31 : i32
    %73 = tpu.dynamic_rotate %67 by %c31_i32 dim 0 : vector<32x128xf32>, i32 -> vector<32x128xf32>
    %74 = vector.broadcast %22 : vector<32x1xf32> to vector<32x128xf32>
    %75 = arith.mulf %73, %74 : vector<32x128xf32>
    %76 = arith.addf %72, %75 : vector<32x128xf32>
    %77 = vector.broadcast %68 : vector<1x128xf32> to vector<32x128xf32>
    %78 = arith.addf %76, %77 : vector<32x128xf32>
    %c0_61 = arith.constant 0 : index
    %c0_62 = arith.constant 0 : index
    %c0_63 = arith.constant 0 : index
    %79 = vector.load %arg4[%c0_61, %c0_62, %c0_63] : memref<3x128x128xf32, #tpu.memory_space<vmem>>, vector<1x128x128xf32>
    %80 = vector.shape_cast %79 : vector<1x128x128xf32> to vector<128x128xf32>
    %cst_64 = arith.constant dense<0.000000e+00> : vector<32x128xf32>
    %81 = tpu.matmul %78, %80, %cst_64 {dimension_numbers = #tpu.dot_dimension_numbers<[1], [0], [0], [1], [0, 0, 1, 1], [], []>} : vector<32x128xf32>, vector<128x128xf32>, vector<32x128xf32> -> vector<32x128xf32>
    %c1_65 = arith.constant 1 : index
    %c0_66 = arith.constant 0 : index
    %c0_67 = arith.constant 0 : index
    %82 = vector.load %arg4[%c1_65, %c0_66, %c0_67] : memref<3x128x128xf32, #tpu.memory_space<vmem>>, vector<1x128x128xf32>
    %83 = vector.shape_cast %82 : vector<1x128x128xf32> to vector<128x128xf32>
    %cst_68 = arith.constant dense<0.000000e+00> : vector<32x128xf32>
    %84 = tpu.matmul %78, %83, %cst_68 {dimension_numbers = #tpu.dot_dimension_numbers<[1], [0], [0], [1], [0, 0, 1, 1], [], []>} : vector<32x128xf32>, vector<128x128xf32>, vector<32x128xf32> -> vector<32x128xf32>
    %c2_69 = arith.constant 2 : index
    %c0_70 = arith.constant 0 : index
    %c0_71 = arith.constant 0 : index
    %85 = vector.load %arg4[%c2_69, %c0_70, %c0_71] : memref<3x128x128xf32, #tpu.memory_space<vmem>>, vector<1x128x128xf32>
    %86 = vector.shape_cast %85 : vector<1x128x128xf32> to vector<128x128xf32>
    %cst_72 = arith.constant dense<0.000000e+00> : vector<32x128xf32>
    %87 = tpu.matmul %78, %86, %cst_72 {dimension_numbers = #tpu.dot_dimension_numbers<[1], [0], [0], [1], [0, 0, 1, 1], [], []>} : vector<32x128xf32>, vector<128x128xf32>, vector<32x128xf32> -> vector<32x128xf32>
    %c0_73 = arith.constant 0 : index
    %c0_74 = arith.constant 0 : index
    %88 = vector.load %arg5[%c0_73, %c0_74] : memref<1x128xf32, #tpu.memory_space<vmem>>, vector<1x128xf32>
    %c1_i32_75 = arith.constant 1 : i32
    %89 = tpu.dynamic_rotate %81 by %c1_i32_75 dim 0 : vector<32x128xf32>, i32 -> vector<32x128xf32>
    %90 = vector.broadcast %18 : vector<32x1xf32> to vector<32x128xf32>
    %91 = arith.mulf %89, %90 : vector<32x128xf32>
    %92 = arith.addf %91, %84 : vector<32x128xf32>
    %c31_i32_76 = arith.constant 31 : i32
    %93 = tpu.dynamic_rotate %87 by %c31_i32_76 dim 0 : vector<32x128xf32>, i32 -> vector<32x128xf32>
    %94 = vector.broadcast %22 : vector<32x1xf32> to vector<32x128xf32>
    %95 = arith.mulf %93, %94 : vector<32x128xf32>
    %96 = arith.addf %92, %95 : vector<32x128xf32>
    %97 = vector.broadcast %88 : vector<1x128xf32> to vector<32x128xf32>
    %98 = arith.addf %96, %97 : vector<32x128xf32>
    %99 = vector.extract_strided_slice %98 {offsets = [0, 0], sizes = [32, 16], strides = [1, 1]} : vector<32x128xf32> to vector<32x16xf32>
    %100 = vector.shape_cast %99 : vector<32x16xf32> to vector<2x1x16x16xf32>
    %c0_77 = arith.constant 0 : index
    %c0_78 = arith.constant 0 : index
    %c0_79 = arith.constant 0 : index
    %c0_80 = arith.constant 0 : index
    %101 = vector.load %arg6[%c0_77, %c0_78, %c0_79, %c0_80] : memref<2x8x16x16xf32, #tpu.memory_space<vmem>>, vector<2x1x16x16xf32>
    tpu.vector_store %arg6[%c0_77, %c0_78, %c0_79, %c0_80], %100 {strides = array<i32>} : memref<2x8x16x16xf32, #tpu.memory_space<vmem>>, vector<2x1x16x16xf32>,
    %102 = vector.extract_strided_slice %98 {offsets = [0, 16], sizes = [32, 16], strides = [1, 1]} : vector<32x128xf32> to vector<32x16xf32>
    %103 = vector.shape_cast %102 : vector<32x16xf32> to vector<2x1x16x16xf32>
    %c0_81 = arith.constant 0 : index
    %c1_82 = arith.constant 1 : index
    %c0_83 = arith.constant 0 : index
    %c0_84 = arith.constant 0 : index
    %104 = vector.load %arg6[%c0_81, %c1_82, %c0_83, %c0_84] : memref<2x8x16x16xf32, #tpu.memory_space<vmem>>, vector<2x1x16x16xf32>
    tpu.vector_store %arg6[%c0_81, %c1_82, %c0_83, %c0_84], %103 {strides = array<i32>} : memref<2x8x16x16xf32, #tpu.memory_space<vmem>>, vector<2x1x16x16xf32>,
    %105 = vector.extract_strided_slice %98 {offsets = [0, 32], sizes = [32, 16], strides = [1, 1]} : vector<32x128xf32> to vector<32x16xf32>
    %106 = vector.shape_cast %105 : vector<32x16xf32> to vector<2x1x16x16xf32>
    %c0_85 = arith.constant 0 : index
    %c2_86 = arith.constant 2 : index
    %c0_87 = arith.constant 0 : index
    %c0_88 = arith.constant 0 : index
    %107 = vector.load %arg6[%c0_85, %c2_86, %c0_87, %c0_88] : memref<2x8x16x16xf32, #tpu.memory_space<vmem>>, vector<2x1x16x16xf32>
    tpu.vector_store %arg6[%c0_85, %c2_86, %c0_87, %c0_88], %106 {strides = array<i32>} : memref<2x8x16x16xf32, #tpu.memory_space<vmem>>, vector<2x1x16x16xf32>,
    %108 = vector.extract_strided_slice %98 {offsets = [0, 48], sizes = [32, 16], strides = [1, 1]} : vector<32x128xf32> to vector<32x16xf32>
    %109 = vector.shape_cast %108 : vector<32x16xf32> to vector<2x1x16x16xf32>
    %c0_89 = arith.constant 0 : index
    %c3_90 = arith.constant 3 : index
    %c0_91 = arith.constant 0 : index
    %c0_92 = arith.constant 0 : index
    %110 = vector.load %arg6[%c0_89, %c3_90, %c0_91, %c0_92] : memref<2x8x16x16xf32, #tpu.memory_space<vmem>>, vector<2x1x16x16xf32>
    tpu.vector_store %arg6[%c0_89, %c3_90, %c0_91, %c0_92], %109 {strides = array<i32>} : memref<2x8x16x16xf32, #tpu.memory_space<vmem>>, vector<2x1x16x16xf32>,
    %111 = vector.extract_strided_slice %98 {offsets = [0, 64], sizes = [32, 16], strides = [1, 1]} : vector<32x128xf32> to vector<32x16xf32>
    %112 = vector.shape_cast %111 : vector<32x16xf32> to vector<2x1x16x16xf32>
    %c0_93 = arith.constant 0 : index
    %c4 = arith.constant 4 : index
    %c0_94 = arith.constant 0 : index
    %c0_95 = arith.constant 0 : index
    %113 = vector.load %arg6[%c0_93, %c4, %c0_94, %c0_95] : memref<2x8x16x16xf32, #tpu.memory_space<vmem>>, vector<2x1x16x16xf32>
    tpu.vector_store %arg6[%c0_93, %c4, %c0_94, %c0_95], %112 {strides = array<i32>} : memref<2x8x16x16xf32, #tpu.memory_space<vmem>>, vector<2x1x16x16xf32>,
    %114 = vector.extract_strided_slice %98 {offsets = [0, 80], sizes = [32, 16], strides = [1, 1]} : vector<32x128xf32> to vector<32x16xf32>
    %115 = vector.shape_cast %114 : vector<32x16xf32> to vector<2x1x16x16xf32>
    %c0_96 = arith.constant 0 : index
    %c5 = arith.constant 5 : index
    %c0_97 = arith.constant 0 : index
    %c0_98 = arith.constant 0 : index
    %116 = vector.load %arg6[%c0_96, %c5, %c0_97, %c0_98] : memref<2x8x16x16xf32, #tpu.memory_space<vmem>>, vector<2x1x16x16xf32>
    tpu.vector_store %arg6[%c0_96, %c5, %c0_97, %c0_98], %115 {strides = array<i32>} : memref<2x8x16x16xf32, #tpu.memory_space<vmem>>, vector<2x1x16x16xf32>,
    %117 = vector.extract_strided_slice %98 {offsets = [0, 96], sizes = [32, 16], strides = [1, 1]} : vector<32x128xf32> to vector<32x16xf32>
    %118 = vector.shape_cast %117 : vector<32x16xf32> to vector<2x1x16x16xf32>
    %c0_99 = arith.constant 0 : index
    %c6 = arith.constant 6 : index
    %c0_100 = arith.constant 0 : index
    %c0_101 = arith.constant 0 : index
    %119 = vector.load %arg6[%c0_99, %c6, %c0_100, %c0_101] : memref<2x8x16x16xf32, #tpu.memory_space<vmem>>, vector<2x1x16x16xf32>
    tpu.vector_store %arg6[%c0_99, %c6, %c0_100, %c0_101], %118 {strides = array<i32>} : memref<2x8x16x16xf32, #tpu.memory_space<vmem>>, vector<2x1x16x16xf32>,
    %120 = vector.extract_strided_slice %98 {offsets = [0, 112], sizes = [32, 16], strides = [1, 1]} : vector<32x128xf32> to vector<32x16xf32>
    %121 = vector.shape_cast %120 : vector<32x16xf32> to vector<2x1x16x16xf32>
    %c0_102 = arith.constant 0 : index
    %c7 = arith.constant 7 : index
    %c0_103 = arith.constant 0 : index
    %c0_104 = arith.constant 0 : index
    %122 = vector.load %arg6[%c0_102, %c7, %c0_103, %c0_104] : memref<2x8x16x16xf32, #tpu.memory_space<vmem>>, vector<2x1x16x16xf32>
    tpu.vector_store %arg6[%c0_102, %c7, %c0_103, %c0_104], %121 {strides = array<i32>} : memref<2x8x16x16xf32, #tpu.memory_space<vmem>>, vector<2x1x16x16xf32>,
    return
  }
  func.func @transform_0(%arg0: i32) -> (i32, i32, i32, i32) {
    %c0_i32 = arith.constant 0 : i32
    %c0_i32_0 = arith.constant 0 : i32
    %c0_i32_1 = arith.constant 0 : i32
    %c0_i32_2 = arith.constant 0 : i32
    %c0_i32_3 = arith.constant 0 : i32
    return %c0_i32, %c0_i32_0, %c0_i32_1, %c0_i32_2 : i32, i32, i32, i32
  }
  func.func @transform_1(%arg0: i32) -> (i32, i32, i32, i32) {
    %c0_i32 = arith.constant 0 : i32
    %c0_i32_0 = arith.constant 0 : i32
    %c0_i32_1 = arith.constant 0 : i32
    %c0_i32_2 = arith.constant 0 : i32
    %c0_i32_3 = arith.constant 0 : i32
    return %c0_i32, %c0_i32_0, %c0_i32_1, %c0_i32_2 : i32, i32, i32, i32
  }
  func.func @transform_2(%arg0: i32) -> (i32, i32) {
    %c0_i32 = arith.constant 0 : i32
    %c0_i32_0 = arith.constant 0 : i32
    %c0_i32_1 = arith.constant 0 : i32
    return %c0_i32, %c0_i32_0 : i32, i32
  }
  func.func @transform_3(%arg0: i32) -> (i32, i32, i32) {
    %c0_i32 = arith.constant 0 : i32
    %c0_i32_0 = arith.constant 0 : i32
    %c0_i32_1 = arith.constant 0 : i32
    %c0_i32_2 = arith.constant 0 : i32
    return %c0_i32, %c0_i32_0, %c0_i32_1 : i32, i32, i32
  }
  func.func @transform_4(%arg0: i32) -> (i32, i32) {
    %c0_i32 = arith.constant 0 : i32
    %c0_i32_0 = arith.constant 0 : i32
    %c0_i32_1 = arith.constant 0 : i32
    return %c0_i32, %c0_i32_0 : i32, i32
  }
  func.func @transform_5(%arg0: i32) -> (i32, i32, i32, i32) {
    %c0_i32 = arith.constant 0 : i32
    %c0_i32_0 = arith.constant 0 : i32
    %c0_i32_1 = arith.constant 0 : i32
    %c0_i32_2 = arith.constant 0 : i32
    %c0_i32_3 = arith.constant 0 : i32
    return %c0_i32, %c0_i32_0, %c0_i32_1, %c0_i32_2 : i32, i32, i32, i32
  }
}

</mosaic_0001>

<llo_original>
// kernel: tpu_custom_call.1
$region0: #{tpu_custom_call.1}
  #allocation0 [shape = 'u32[]', space=smem, size = 0x4, offset = 0x4, fixed_abs, tag = 'smem constant byte address 0x4 - core index']
  #allocation1 [shape = 'u32[144,128]{1,0:T(1,128)}', space=vmem, size = 0x12000, scoped, tag = 'internal scratch']
  %s0 = inlined_call_operand.hbm [shape: f32[2,4,16,16], index: 0, kind: input, shape index: {}]
  %s1 = inlined_call_operand.hbm [shape: f32[3,4,16,128], index: 1, kind: input, shape index: {}]
  %s2 = inlined_call_operand.vmem [shape: f32[1,128], index: 2, kind: input, shape index: {}]
  %s3 = inlined_call_operand.hbm [shape: f32[3,128,128], index: 3, kind: input, shape index: {}]
  %s4 = inlined_call_operand.vmem [shape: f32[1,128], index: 4, kind: input, shape index: {}]
  %s5 = inlined_call_operand.hbm [shape: f32[2,8,16,16], index: 5, kind: output, shape index: {}]
  %s6 = sld [smem:[#allocation0]]
  $region42: #{tpu_custom_call.1} parent=0
    _
  %s8 = ssub.s32 1, %s6
  %s9 = scalar_select 0, %s8, %s6
  $region1: #{tpu_custom_call.1} parent=0
    #allocation2 [shape = 'u8[65536]{0}', space=vmem, size = 0x10000, scoped, tag = 'input window, operand 0, single buffered']
    #allocation3 [shape = 's32[1]{0}', space=sflag, size = 0x4, scoped, tag = 'scoped memory for tpu_custom_call.1']
    #allocation4 [shape = 's32[1]{0}', space=sflag, size = 0x4, scoped, tag = 'scoped memory for tpu_custom_call.1']
    #allocation5 [shape = 'u8[98304]{0}', space=vmem, size = 0x18000, scoped, tag = 'input window, operand 1, single buffered']
    #allocation6 [shape = 's32[1]{0}', space=sflag, size = 0x4, scoped, tag = 'scoped memory for tpu_custom_call.1']
    #allocation7 [shape = 'u8[196608]{0}', space=vmem, size = 0x30000, scoped, tag = 'input window, operand 3, single buffered']
    #allocation8 [shape = 'u8[131072]{0}', space=vmem, size = 0x20000, scoped, tag = 'output window, operand 0, single buffered']
    %10 = vsyncpa [#allocation3], 0
    %11 = vsyncpa [#allocation6], 0
    %12 = vsyncpa [#allocation4], 0
    // Predicated region
    $region2: #{tpu_custom_call.1} parent=1 // pred_check
      _
    $region3: #{tpu_custom_call.1} parent=1 // pred_check_branch
      %14 = sbr.rel (0) target = $region5
    $region4: #{tpu_custom_call.1} parent=1 // pred_region
      %s16 = ssub.s32 2048, 2048
      %17 = vsyncadd [#allocation3], %s16
      %s18 = sshll.u32 [#allocation2], 4
      %s19 = int_to_ptr.vmem [resolvable:$true] %s18
      %24 = dma.hbm_to_vmem [thread:$0]  %s0, 2048, %s19, [#allocation3], 128, 128, 8
    $region5: #{tpu_custom_call.1} parent=1 // pred_fallthru
      _
    // Predicated region
    $region6: #{tpu_custom_call.1} parent=1 // pred_check
      _
    $region7: #{tpu_custom_call.1} parent=1 // pred_check_branch
      %26 = sbr.rel (0) target = $region9
    $region8: #{tpu_custom_call.1} parent=1 // pred_region
      %s28 = ssub.s32 3072, 3072
      %29 = vsyncadd [#allocation6], %s28
      %s30 = sshll.u32 [#allocation5], 4
      %s31 = int_to_ptr.vmem [resolvable:$true] %s30
      %36 = dma.hbm_to_vmem [thread:$0]  %s1, 3072, %s31, [#allocation6], 128, 128, 8
    $region9: #{tpu_custom_call.1} parent=1 // pred_fallthru
      _
    // Predicated region
    $region10: #{tpu_custom_call.1} parent=1 // pred_check
      _
    $region11: #{tpu_custom_call.1} parent=1 // pred_check_branch
      %38 = sbr.rel (0) target = $region13
    $region12: #{tpu_custom_call.1} parent=1 // pred_region
      _
    $region13: #{tpu_custom_call.1} parent=1 // pred_fallthru
      _
    // Predicated region
    $region14: #{tpu_custom_call.1} parent=1 // pred_check
      _
    $region15: #{tpu_custom_call.1} parent=1 // pred_check_branch
      %40 = sbr.rel (0) target = $region17
    $region16: #{tpu_custom_call.1} parent=1 // pred_region
      %s42 = ssub.s32 6144, 6144
      %43 = vsyncadd [#allocation6], %s42
      %s44 = sshll.u32 [#allocation7], 4
      %s45 = int_to_ptr.vmem [resolvable:$true] %s44
      %50 = dma.hbm_to_vmem [thread:$0]  %s3, 6144, %s45, [#allocation6], 128, 128, 8
    $region17: #{tpu_custom_call.1} parent=1 // pred_fallthru
      _
    // Predicated region
    $region18: #{tpu_custom_call.1} parent=1 // pred_check
      _
    $region19: #{tpu_custom_call.1} parent=1 // pred_check_branch
      %52 = sbr.rel (0) target = $region21
    $region20: #{tpu_custom_call.1} parent=1 // pred_region
      _
    $region21: #{tpu_custom_call.1} parent=1 // pred_fallthru
      _
    // Predicated region
    $region22: #{tpu_custom_call.1} parent=1 // pred_check
      _
    $region23: #{tpu_custom_call.1} parent=1 // pred_check_branch
      %54 = sbr.rel (0) target = $region25
    $region24: #{tpu_custom_call.1} parent=1 // pred_region
      %55 = dma.done [#allocation3], 2048
    $region25: #{tpu_custom_call.1} parent=1 // pred_fallthru
      _
    // Predicated region
    $region26: #{tpu_custom_call.1} parent=1 // pred_check
      _
    $region27: #{tpu_custom_call.1} parent=1 // pred_check_branch
      %57 = sbr.rel (0) target = $region29
    $region28: #{tpu_custom_call.1} parent=1 // pred_region
      %58 = dma.done [#allocation6], 3072
    $region29: #{tpu_custom_call.1} parent=1 // pred_fallthru
      _
    // Predicated region
    $region30: #{tpu_custom_call.1} parent=1 // pred_check
      _
    $region31: #{tpu_custom_call.1} parent=1 // pred_check_branch
      %60 = sbr.rel (0) target = $region33
    $region32: #{tpu_custom_call.1} parent=1 // pred_region
      %61 = dma.done [#allocation6], 6144
    $region33: #{tpu_custom_call.1} parent=1 // pred_fallthru
      _
    %v62 = vld [vmem:[#allocation2] sm:$0xff]
    %v63 = vld [vmem:[#allocation2 + $0x8] sm:$0xff]
    %v64 = vld [vmem:[#allocation2 + $0x10] sm:$0xff]
    %v65 = vld [vmem:[#allocation2 + $0x18] sm:$0xff]
    %v66 = vld [vmem:[#allocation2 + $0x20] sm:$0xff]
    %v67 = vld [vmem:[#allocation2 + $0x28] sm:$0xff]
    %v68 = vld [vmem:[#allocation2 + $0x30] sm:$0xff]
    %v69 = vld [vmem:[#allocation2 + $0x38] sm:$0xff]
    %v70 = vld [vmem:[#allocation2 + $0x40] sm:$0xff]
    %v71 = vld [vmem:[#allocation2 + $0x48] sm:$0xff]
    %v72 = vld [vmem:[#allocation2 + $0x50] sm:$0xff]
    %v73 = vld [vmem:[#allocation2 + $0x58] sm:$0xff]
    %v74 = vld [vmem:[#allocation2 + $0x60] sm:$0xff]
    %v75 = vld [vmem:[#allocation2 + $0x68] sm:$0xff]
    %v76 = vld [vmem:[#allocation2 + $0x70] sm:$0xff]
    %v77 = vld [vmem:[#allocation2 + $0x78] sm:$0xff]
    %v78 = vlaneseq
    %v79 = vshrl.u32 %v78, 7
    %v80 = vadd.s32 %v79, 8
    %vm81 = vcmp.ne.s32.totalorder %v79, 0
    %vm82 = vcmp.ne.s32.totalorder %v80, 0
    %v83 = vsel %vm81, 1, 0
    %v84 = vsel %vm82, 1, 0
    %v85 = vcvt.s32.f32 %v83
    %v86 = vcvt.s32.f32 %v84
    %vm87 = vcmp.ne.s32.totalorder %v79, 15
    %vm88 = vcmp.ne.s32.totalorder %v80, 15
    %v89 = vsel %vm87, 1, 0
    %v90 = vsel %vm88, 1, 0
    %v91 = vcvt.s32.f32 %v89
    %v92 = vcvt.s32.f32 %v90
    %v93 = vld [vmem:[#allocation5] sm:$0xff]
    %v94 = vld [vmem:[#allocation5 + $0x8] sm:$0xff]
    %s95 = scalar_lea.vmem [#allocation5], 16
    %v96 = vld [vmem:[%s95] sm:$0xff]
    %v97 = vld [vmem:[%s95 + $0x8] sm:$0xff]
    %vm98 = vcmask 130048
    %v100 = vsel %vm98, %v64, 0
    %v103 = vsel %vm98, %v65, 0
    %v106 = vsel %vm98, %v72, 0
    %v109 = vsel %vm98, %v73, 0
    %111 = vmatprep.subr.mxu0 0.0
    %112 = vmatpush1.msra.mxu0 0.0
    %113 = vmatprep.subr.mxu0 0.0
    %114 = vmatpush1.msra.mxu0 0.0
    %115 = vmatprep.subr.mxu0 0.0
    %116 = vmatpush1.msra.mxu0 0.0
    %117 = vmatprep.subr.mxu0 0.0
    %118 = vmatpush1.msra.mxu0 0.0
    %119 = vmatprep.subr.mxu0 0.0
    %120 = vmatpush1.msra.mxu0 0.0
    %121 = vmatprep.subr.mxu0 0.0
    %122 = vmatpush1.msra.mxu0 0.0
    %123 = vmatprep.subr.mxu0 0.0
    %124 = vmatpush1.msra.mxu0 0.0
    %125 = vmatprep.subr.mxu0 0.0
    %126 = vmatpush1.msra.mxu0 0.0
    %127 = vmatprep.subr.mxu0 0.0
    %128 = vmatpush1.msra.mxu0 0.0
    %129 = vmatprep.subr.mxu0 0.0
    %130 = vmatpush1.msra.mxu0 0.0
    %131 = vmatprep.subr.mxu0 0.0
    %132 = vmatpush1.msra.mxu0 0.0
    %133 = vmatprep.subr.mxu0 0.0
    %134 = vmatpush1.msra.mxu0 0.0
    %135 = vmatprep.subr.mxu0 0.0
    %136 = vmatpush1.msra.mxu0 0.0
    %137 = vmatprep.subr.mxu0 0.0
    %138 = vmatpush1.msra.mxu0 0.0
    %139 = vmatprep.subr.mxu0 0.0
    %140 = vmatpush1.msra.mxu0 %v97
    %141 = vmatprep.subr.mxu0 0.0
    %142 = vmatpush1.msra.mxu0 %v96
    %143 = vmatprep.subr.mxu0 0.0
    %144 = vmatpush2.msra.mxu0 0.0
    %145 = vmatprep.subr.mxu0 0.0
    %146 = vmatpush2.msra.mxu0 0.0
    %147 = vmatprep.subr.mxu0 0.0
    %148 = vmatpush2.msra.mxu0 0.0
    %149 = vmatprep.subr.mxu0 0.0
    %150 = vmatpush2.msra.mxu0 0.0
    %151 = vmatprep.subr.mxu0 0.0
    %152 = vmatpush2.msra.mxu0 0.0
    %153 = vmatprep.subr.mxu0 0.0
    %154 = vmatpush2.msra.mxu0 0.0
    %155 = vmatprep.subr.mxu0 0.0
    %156 = vmatpush2.msra.mxu0 0.0
    %157 = vmatprep.subr.mxu0 0.0
    %158 = vmatpush2.msra.mxu0 0.0
    %159 = vmatprep.subr.mxu0 0.0
    %160 = vmatpush2.msra.mxu0 0.0
    %161 = vmatprep.subr.mxu0 0.0
    %162 = vmatpush2.msra.mxu0 0.0
    %163 = vmatprep.subr.mxu0 0.0
    %164 = vmatpush2.msra.mxu0 0.0
    %165 = vmatprep.subr.mxu0 0.0
    %166 = vmatpush2.msra.mxu0 0.0
    %167 = vmatprep.subr.mxu0 0.0
    %168 = vmatpush2.msra.mxu0 0.0
    %169 = vmatprep.subr.mxu0 0.0
    %170 = vmatpush2.msra.mxu0 0.0
    %171 = vmatprep.subr.mxu0 0.0
    %172 = vmatpush2.msra.mxu0 0.0
    %173 = vmatprep.subr.mxu0 0.0
    %174 = vmatpush2.msra.mxu0 0.0
    %175 = vmatprep.mubr.f32.mxu0 0.0
    %176 = vmatmul.mubr.f32.gmra.mxu0 %v100
    %v177 = vpop.f32.mrf.mxu0
    %v178 = vadd.f32 0.0, %v177
    %v179 = vpop.f32.mrf.mxu0
    %180 = vmatprep.mubr.f32.mxu0 0.0
    %181 = vmatmul.mubr.f32.gmra.mxu0 %v103
    %v182 = vpop.f32.mrf.mxu0
    %v183 = vadd.f32 0.0, %v182
    %v184 = vpop.f32.mrf.mxu0
    %185 = vmatprep.mubr.f32.mxu0 0.0
    %186 = vmatmul.mubr.f32.gmra.mxu0 %v106
    %v187 = vpop.f32.mrf.mxu0
    %v188 = vadd.f32 0.0, %v187
    %v189 = vpop.f32.mrf.mxu0
    %190 = vmatprep.mubr.f32.mxu0 0.0
    %191 = vmatmul.mubr.f32.gmra.mxu0 %v109
    %v192 = vpop.f32.mrf.mxu0
    %v193 = vadd.f32 0.0, %v192
    %v194 = vpop.f32.mrf.mxu0
    %195 = vdwg.mxu0
    %v197 = vsel %vm98, %v62, 0
    %v200 = vsel %vm98, %v63, 0
    %v203 = vsel %vm98, %v70, 0
    %v206 = vsel %vm98, %v71, 0
    %208 = vmatprep.subr.mxu0 0.0
    %209 = vmatpush1.msra.mxu0 0.0
    %210 = vmatprep.subr.mxu0 0.0
    %211 = vmatpush1.msra.mxu0 0.0
    %212 = vmatprep.subr.mxu0 0.0
    %213 = vmatpush1.msra.mxu0 0.0
    %214 = vmatprep.subr.mxu0 0.0
    %215 = vmatpush1.msra.mxu0 0.0
    %216 = vmatprep.subr.mxu0 0.0
    %217 = vmatpush1.msra.mxu0 0.0
    %218 = vmatprep.subr.mxu0 0.0
    %219 = vmatpush1.msra.mxu0 0.0
    %220 = vmatprep.subr.mxu0 0.0
    %221 = vmatpush1.msra.mxu0 0.0
    %222 = vmatprep.subr.mxu0 0.0
    %223 = vmatpush1.msra.mxu0 0.0
    %224 = vmatprep.subr.mxu0 0.0
    %225 = vmatpush1.msra.mxu0 0.0
    %226 = vmatprep.subr.mxu0 0.0
    %227 = vmatpush1.msra.mxu0 0.0
    %228 = vmatprep.subr.mxu0 0.0
    %229 = vmatpush1.msra.mxu0 0.0
    %230 = vmatprep.subr.mxu0 0.0
    %231 = vmatpush1.msra.mxu0 0.0
    %232 = vmatprep.subr.mxu0 0.0
    %233 = vmatpush1.msra.mxu0 0.0
    %234 = vmatprep.subr.mxu0 0.0
    %235 = vmatpush1.msra.mxu0 0.0
    %236 = vmatprep.subr.mxu0 0.0
    %237 = vmatpush1.msra.mxu0 %v94
    %238 = vmatprep.subr.mxu0 0.0
    %239 = vmatpush1.msra.mxu0 %v93
    %240 = vmatprep.subr.mxu0 0.0
    %241 = vmatpush2.msra.mxu0 0.0
    %242 = vmatprep.subr.mxu0 0.0
    %243 = vmatpush2.msra.mxu0 0.0
    %244 = vmatprep.subr.mxu0 0.0
    %245 = vmatpush2.msra.mxu0 0.0
    %246 = vmatprep.subr.mxu0 0.0
    %247 = vmatpush2.msra.mxu0 0.0
    %248 = vmatprep.subr.mxu0 0.0
    %249 = vmatpush2.msra.mxu0 0.0
    %250 = vmatprep.subr.mxu0 0.0
    %251 = vmatpush2.msra.mxu0 0.0
    %252 = vmatprep.subr.mxu0 0.0
    %253 = vmatpush2.msra.mxu0 0.0
    %254 = vmatprep.subr.mxu0 0.0
    %255 = vmatpush2.msra.mxu0 0.0
    %256 = vmatprep.subr.mxu0 0.0
    %257 = vmatpush2.msra.mxu0 0.0
    %258 = vmatprep.subr.mxu0 0.0
    %259 = vmatpush2.msra.mxu0 0.0
    %260 = vmatprep.subr.mxu0 0.0
    %261 = vmatpush2.msra.mxu0 0.0
    %262 = vmatprep.subr.mxu0 0.0
    %263 = vmatpush2.msra.mxu0 0.0
    %264 = vmatprep.subr.mxu0 0.0
    %265 = vmatpush2.msra.mxu0 0.0
    %266 = vmatprep.subr.mxu0 0.0
    %267 = vmatpush2.msra.mxu0 0.0
    %268 = vmatprep.subr.mxu0 0.0
    %269 = vmatpush2.msra.mxu0 0.0
    %270 = vmatprep.subr.mxu0 0.0
    %271 = vmatpush2.msra.mxu0 0.0
    %272 = vmatprep.mubr.f32.mxu0 0.0
    %273 = vmatmul.mubr.f32.gmra.mxu0 %v197
    %v274 = vpop.f32.mrf.mxu0
    %v275 = vadd.f32 %v178, %v274
    %v276 = vpop.f32.mrf.mxu0
    %277 = vmatprep.mubr.f32.mxu0 0.0
    %278 = vmatmul.mubr.f32.gmra.mxu0 %v200
    %v279 = vpop.f32.mrf.mxu0
    %v280 = vadd.f32 %v183, %v279
    %v281 = vpop.f32.mrf.mxu0
    %282 = vmatprep.mubr.f32.mxu0 0.0
    %283 = vmatmul.mubr.f32.gmra.mxu0 %v203
    %v284 = vpop.f32.mrf.mxu0
    %v285 = vadd.f32 %v188, %v284
    %v286 = vpop.f32.mrf.mxu0
    %287 = vmatprep.mubr.f32.mxu0 0.0
    %288 = vmatmul.mubr.f32.gmra.mxu0 %v206
    %v289 = vpop.f32.mrf.mxu0
    %v290 = vadd.f32 %v193, %v289
    %v291 = vpop.f32.mrf.mxu0
    %292 = vdwg.mxu0
    %s293 = scalar_lea.vmem [#allocation5], 32
    %v294 = vld [vmem:[%s293] sm:$0xff]
    %v295 = vld [vmem:[%s293 + $0x8] sm:$0xff]
    %v297 = vsel %vm98, %v66, 0
    %v300 = vsel %vm98, %v67, 0
    %v303 = vsel %vm98, %v74, 0
    %v306 = vsel %vm98, %v75, 0
    %308 = vmatprep.subr.mxu0 0.0
    %309 = vmatpush1.msra.mxu0 0.0
    %310 = vmatprep.subr.mxu0 0.0
    %311 = vmatpush1.msra.mxu0 0.0
    %312 = vmatprep.subr.mxu0 0.0
    %313 = vmatpush1.msra.mxu0 0.0
    %314 = vmatprep.subr.mxu0 0.0
    %315 = vmatpush1.msra.mxu0 0.0
    %316 = vmatprep.subr.mxu0 0.0
    %317 = vmatpush1.msra.mxu0 0.0
    %318 = vmatprep.subr.mxu0 0.0
    %319 = vmatpush1.msra.mxu0 0.0
    %320 = vmatprep.subr.mxu0 0.0
    %321 = vmatpush1.msra.mxu0 0.0
    %322 = vmatprep.subr.mxu0 0.0
    %323 = vmatpush1.msra.mxu0 0.0
    %324 = vmatprep.subr.mxu0 0.0
    %325 = vmatpush1.msra.mxu0 0.0
    %326 = vmatprep.subr.mxu0 0.0
    %327 = vmatpush1.msra.mxu0 0.0
    %328 = vmatprep.subr.mxu0 0.0
    %329 = vmatpush1.msra.mxu0 0.0
    %330 = vmatprep.subr.mxu0 0.0
    %331 = vmatpush1.msra.mxu0 0.0
    %332 = vmatprep.subr.mxu0 0.0
    %333 = vmatpush1.msra.mxu0 0.0
    %334 = vmatprep.subr.mxu0 0.0
    %335 = vmatpush1.msra.mxu0 0.0
    %336 = vmatprep.subr.mxu0 0.0
    %337 = vmatpush1.msra.mxu0 %v295
    %338 = vmatprep.subr.mxu0 0.0
    %339 = vmatpush1.msra.mxu0 %v294
    %340 = vmatprep.subr.mxu0 0.0
    %341 = vmatpush2.msra.mxu0 0.0
    %342 = vmatprep.subr.mxu0 0.0
    %343 = vmatpush2.msra.mxu0 0.0
    %344 = vmatprep.subr.mxu0 0.0
    %345 = vmatpush2.msra.mxu0 0.0
    %346 = vmatprep.subr.mxu0 0.0
    %347 = vmatpush2.msra.mxu0 0.0
    %348 = vmatprep.subr.mxu0 0.0
    %349 = vmatpush2.msra.mxu0 0.0
    %350 = vmatprep.subr.mxu0 0.0
    %351 = vmatpush2.msra.mxu0 0.0
    %352 = vmatprep.subr.mxu0 0.0
    %353 = vmatpush2.msra.mxu0 0.0
    %354 = vmatprep.subr.mxu0 0.0
    %355 = vmatpush2.msra.mxu0 0.0
    %356 = vmatprep.subr.mxu0 0.0
    %357 = vmatpush2.msra.mxu0 0.0
    %358 = vmatprep.subr.mxu0 0.0
    %359 = vmatpush2.msra.mxu0 0.0
    %360 = vmatprep.subr.mxu0 0.0
    %361 = vmatpush2.msra.mxu0 0.0
    %362 = vmatprep.subr.mxu0 0.0
    %363 = vmatpush2.msra.mxu0 0.0
    %364 = vmatprep.subr.mxu0 0.0
    %365 = vmatpush2.msra.mxu0 0.0
    %366 = vmatprep.subr.mxu0 0.0
    %367 = vmatpush2.msra.mxu0 0.0
    %368 = vmatprep.subr.mxu0 0.0
    %369 = vmatpush2.msra.mxu0 0.0
    %370 = vmatprep.subr.mxu0 0.0
    %371 = vmatpush2.msra.mxu0 0.0
    %372 = vmatprep.mubr.f32.mxu0 0.0
    %373 = vmatmul.mubr.f32.gmra.mxu0 %v297
    %v374 = vpop.f32.mrf.mxu0
    %v375 = vadd.f32 0.0, %v374
    %v376 = vpop.f32.mrf.mxu0
    %377 = vmatprep.mubr.f32.mxu0 0.0
    %378 = vmatmul.mubr.f32.gmra.mxu0 %v300
    %v379 = vpop.f32.mrf.mxu0
    %v380 = vadd.f32 0.0, %v379
    %v381 = vpop.f32.mrf.mxu0
    %382 = vmatprep.mubr.f32.mxu0 0.0
    %383 = vmatmul.mubr.f32.gmra.mxu0 %v303
    %v384 = vpop.f32.mrf.mxu0
    %v385 = vadd.f32 0.0, %v384
    %v386 = vpop.f32.mrf.mxu0
    %387 = vmatprep.mubr.f32.mxu0 0.0
    %388 = vmatmul.mubr.f32.gmra.mxu0 %v306
    %v389 = vpop.f32.mrf.mxu0
    %v390 = vadd.f32 0.0, %v389
    %v391 = vpop.f32.mrf.mxu0
    %392 = vdwg.mxu0
    %v393 = vadd.f32 %v275, %v375
    %v394 = vadd.f32 %v280, %v380
    %v395 = vadd.f32 %v285, %v385
    %v396 = vadd.f32 %v290, %v390
    %s397 = scalar_lea.vmem [#allocation5], 48
    %v398 = vld [vmem:[%s397] sm:$0xff]
    %v399 = vld [vmem:[%s397 + $0x8] sm:$0xff]
    %v401 = vsel %vm98, %v68, 0
    %v404 = vsel %vm98, %v69, 0
    %v407 = vsel %vm98, %v76, 0
    %v410 = vsel %vm98, %v77, 0
    %412 = vmatprep.subr.mxu0 0.0
    %413 = vmatpush1.msra.mxu0 0.0
    %414 = vmatprep.subr.mxu0 0.0
    %415 = vmatpush1.msra.mxu0 0.0
    %416 = vmatprep.subr.mxu0 0.0
    %417 = vmatpush1.msra.mxu0 0.0
    %418 = vmatprep.subr.mxu0 0.0
    %419 = vmatpush1.msra.mxu0 0.0
    %420 = vmatprep.subr.mxu0 0.0
    %421 = vmatpush1.msra.mxu0 0.0
    %422 = vmatprep.subr.mxu0 0.0
    %423 = vmatpush1.msra.mxu0 0.0
    %424 = vmatprep.subr.mxu0 0.0
    %425 = vmatpush1.msra.mxu0 0.0
    %426 = vmatprep.subr.mxu0 0.0
    %427 = vmatpush1.msra.mxu0 0.0
    %428 = vmatprep.subr.mxu0 0.0
    %429 = vmatpush1.msra.mxu0 0.0
    %430 = vmatprep.subr.mxu0 0.0
    %431 = vmatpush1.msra.mxu0 0.0
    %432 = vmatprep.subr.mxu0 0.0
    %433 = vmatpush1.msra.mxu0 0.0
    %434 = vmatprep.subr.mxu0 0.0
    %435 = vmatpush1.msra.mxu0 0.0
    %436 = vmatprep.subr.mxu0 0.0
    %437 = vmatpush1.msra.mxu0 0.0
    %438 = vmatprep.subr.mxu0 0.0
    %439 = vmatpush1.msra.mxu0 0.0
    %440 = vmatprep.subr.mxu0 0.0
    %441 = vmatpush1.msra.mxu0 %v399
    %442 = vmatprep.subr.mxu0 0.0
    %443 = vmatpush1.msra.mxu0 %v398
    %444 = vmatprep.subr.mxu0 0.0
    %445 = vmatpush2.msra.mxu0 0.0
    %446 = vmatprep.subr.mxu0 0.0
    %447 = vmatpush2.msra.mxu0 0.0
    %448 = vmatprep.subr.mxu0 0.0
    %449 = vmatpush2.msra.mxu0 0.0
    %450 = vmatprep.subr.mxu0 0.0
    %451 = vmatpush2.msra.mxu0 0.0
    %452 = vmatprep.subr.mxu0 0.0
    %453 = vmatpush2.msra.mxu0 0.0
    %454 = vmatprep.subr.mxu0 0.0
    %455 = vmatpush2.msra.mxu0 0.0
    %456 = vmatprep.subr.mxu0 0.0
    %457 = vmatpush2.msra.mxu0 0.0
    %458 = vmatprep.subr.mxu0 0.0
    %459 = vmatpush2.msra.mxu0 0.0
    %460 = vmatprep.subr.mxu0 0.0
    %461 = vmatpush2.msra.mxu0 0.0
    %462 = vmatprep.subr.mxu0 0.0
    %463 = vmatpush2.msra.mxu0 0.0
    %464 = vmatprep.subr.mxu0 0.0
    %465 = vmatpush2.msra.mxu0 0.0
    %466 = vmatprep.subr.mxu0 0.0
    %467 = vmatpush2.msra.mxu0 0.0
    %468 = vmatprep.subr.mxu0 0.0
    %469 = vmatpush2.msra.mxu0 0.0
    %470 = vmatprep.subr.mxu0 0.0
    %471 = vmatpush2.msra.mxu0 0.0
    %472 = vmatprep.subr.mxu0 0.0
    %473 = vmatpush2.msra.mxu0 0.0
    %474 = vmatprep.subr.mxu0 0.0
    %475 = vmatpush2.msra.mxu0 0.0
    %476 = vmatprep.mubr.f32.mxu0 0.0
    %477 = vmatmul.mubr.f32.gmra.mxu0 %v401
    %v478 = vpop.f32.mrf.mxu0
    %v479 = vadd.f32 0.0, %v478
    %v480 = vpop.f32.mrf.mxu0
    %481 = vmatprep.mubr.f32.mxu0 0.0
    %482 = vmatmul.mubr.f32.gmra.mxu0 %v404
    %v483 = vpop.f32.mrf.mxu0
    %v484 = vadd.f32 0.0, %v483
    %v485 = vpop.f32.mrf.mxu0
    %486 = vmatprep.mubr.f32.mxu0 0.0
    %487 = vmatmul.mubr.f32.gmra.mxu0 %v407
    %v488 = vpop.f32.mrf.mxu0
    %v489 = vadd.f32 0.0, %v488
    %v490 = vpop.f32.mrf.mxu0
    %491 = vmatprep.mubr.f32.mxu0 0.0
    %492 = vmatmul.mubr.f32.gmra.mxu0 %v410
    %v493 = vpop.f32.mrf.mxu0
    %v494 = vadd.f32 0.0, %v493
    %v495 = vpop.f32.mrf.mxu0
    %496 = vdwg.mxu0
    %v497 = vadd.f32 %v393, %v479
    %v498 = vadd.f32 %v394, %v484
    %v499 = vadd.f32 %v395, %v489
    %v500 = vadd.f32 %v396, %v494
    %s501 = scalar_lea.vmem [#allocation5], 64
    %v502 = vld [vmem:[%s501] sm:$0xff]
    %v503 = vld [vmem:[%s501 + $0x8] sm:$0xff]
    %s504 = scalar_lea.vmem [#allocation5], 80
    %v505 = vld [vmem:[%s504] sm:$0xff]
    %v506 = vld [vmem:[%s504 + $0x8] sm:$0xff]
    %507 = vmatprep.subr.mxu0 0.0
    %508 = vmatpush1.msra.mxu0 0.0
    %509 = vmatprep.subr.mxu0 0.0
    %510 = vmatpush1.msra.mxu0 0.0
    %511 = vmatprep.subr.mxu0 0.0
    %512 = vmatpush1.msra.mxu0 0.0
    %513 = vmatprep.subr.mxu0 0.0
    %514 = vmatpush1.msra.mxu0 0.0
    %515 = vmatprep.subr.mxu0 0.0
    %516 = vmatpush1.msra.mxu0 0.0
    %517 = vmatprep.subr.mxu0 0.0
    %518 = vmatpush1.msra.mxu0 0.0
    %519 = vmatprep.subr.mxu0 0.0
    %520 = vmatpush1.msra.mxu0 0.0
    %521 = vmatprep.subr.mxu0 0.0
    %522 = vmatpush1.msra.mxu0 0.0
    %523 = vmatprep.subr.mxu0 0.0
    %524 = vmatpush1.msra.mxu0 0.0
    %525 = vmatprep.subr.mxu0 0.0
    %526 = vmatpush1.msra.mxu0 0.0
    %527 = vmatprep.subr.mxu0 0.0
    %528 = vmatpush1.msra.mxu0 0.0
    %529 = vmatprep.subr.mxu0 0.0
    %530 = vmatpush1.msra.mxu0 0.0
    %531 = vmatprep.subr.mxu0 0.0
    %532 = vmatpush1.msra.mxu0 0.0
    %533 = vmatprep.subr.mxu0 0.0
    %534 = vmatpush1.msra.mxu0 0.0
    %535 = vmatprep.subr.mxu0 0.0
    %536 = vmatpush1.msra.mxu0 %v506
    %537 = vmatprep.subr.mxu0 0.0
    %538 = vmatpush1.msra.mxu0 %v505
    %539 = vmatprep.subr.mxu0 0.0
    %540 = vmatpush2.msra.mxu0 0.0
    %541 = vmatprep.subr.mxu0 0.0
    %542 = vmatpush2.msra.mxu0 0.0
    %543 = vmatprep.subr.mxu0 0.0
    %544 = vmatpush2.msra.mxu0 0.0
    %545 = vmatprep.subr.mxu0 0.0
    %546 = vmatpush2.msra.mxu0 0.0
    %547 = vmatprep.subr.mxu0 0.0
    %548 = vmatpush2.msra.mxu0 0.0
    %549 = vmatprep.subr.mxu0 0.0
    %550 = vmatpush2.msra.mxu0 0.0
    %551 = vmatprep.subr.mxu0 0.0
    %552 = vmatpush2.msra.mxu0 0.0
    %553 = vmatprep.subr.mxu0 0.0
    %554 = vmatpush2.msra.mxu0 0.0
    %555 = vmatprep.subr.mxu0 0.0
    %556 = vmatpush2.msra.mxu0 0.0
    %557 = vmatprep.subr.mxu0 0.0
    %558 = vmatpush2.msra.mxu0 0.0
    %559 = vmatprep.subr.mxu0 0.0
    %560 = vmatpush2.msra.mxu0 0.0
    %561 = vmatprep.subr.mxu0 0.0
    %562 = vmatpush2.msra.mxu0 0.0
    %563 = vmatprep.subr.mxu0 0.0
    %564 = vmatpush2.msra.mxu0 0.0
    %565 = vmatprep.subr.mxu0 0.0
    %566 = vmatpush2.msra.mxu0 0.0
    %567 = vmatprep.subr.mxu0 0.0
    %568 = vmatpush2.msra.mxu0 0.0
    %569 = vmatprep.subr.mxu0 0.0
    %570 = vmatpush2.msra.mxu0 0.0
    %571 = vmatprep.mubr.f32.mxu0 0.0
    %572 = vmatmul.mubr.f32.gmra.mxu0 %v100
    %v573 = vpop.f32.mrf.mxu0
    %v574 = vadd.f32 0.0, %v573
    %v575 = vpop.f32.mrf.mxu0
    %576 = vmatprep.mubr.f32.mxu0 0.0
    %577 = vmatmul.mubr.f32.gmra.mxu0 %v103
    %v578 = vpop.f32.mrf.mxu0
    %v579 = vadd.f32 0.0, %v578
    %v580 = vpop.f32.mrf.mxu0
    %581 = vmatprep.mubr.f32.mxu0 0.0
    %582 = vmatmul.mubr.f32.gmra.mxu0 %v106
    %v583 = vpop.f32.mrf.mxu0
    %v584 = vadd.f32 0.0, %v583
    %v585 = vpop.f32.mrf.mxu0
    %586 = vmatprep.mubr.f32.mxu0 0.0
    %587 = vmatmul.mubr.f32.gmra.mxu0 %v109
    %v588 = vpop.f32.mrf.mxu0
    %v589 = vadd.f32 0.0, %v588
    %v590 = vpop.f32.mrf.mxu0
    %591 = vdwg.mxu0
    %592 = vmatprep.subr.mxu0 0.0
    %593 = vmatpush1.msra.mxu0 0.0
    %594 = vmatprep.subr.mxu0 0.0
    %595 = vmatpush1.msra.mxu0 0.0
    %596 = vmatprep.subr.mxu0 0.0
    %597 = vmatpush1.msra.mxu0 0.0
    %598 = vmatprep.subr.mxu0 0.0
    %599 = vmatpush1.msra.mxu0 0.0
    %600 = vmatprep.subr.mxu0 0.0
    %601 = vmatpush1.msra.mxu0 0.0
    %602 = vmatprep.subr.mxu0 0.0
    %603 = vmatpush1.msra.mxu0 0.0
    %604 = vmatprep.subr.mxu0 0.0
    %605 = vmatpush1.msra.mxu0 0.0
    %606 = vmatprep.subr.mxu0 0.0
    %607 = vmatpush1.msra.mxu0 0.0
    %608 = vmatprep.subr.mxu0 0.0
    %609 = vmatpush1.msra.mxu0 0.0
    %610 = vmatprep.subr.mxu0 0.0
    %611 = vmatpush1.msra.mxu0 0.0
    %612 = vmatprep.subr.mxu0 0.0
    %613 = vmatpush1.msra.mxu0 0.0
    %614 = vmatprep.subr.mxu0 0.0
    %615 = vmatpush1.msra.mxu0 0.0
    %616 = vmatprep.subr.mxu0 0.0
    %617 = vmatpush1.msra.mxu0 0.0
    %618 = vmatprep.subr.mxu0 0.0
    %619 = vmatpush1.msra.mxu0 0.0
    %620 = vmatprep.subr.mxu0 0.0
    %621 = vmatpush1.msra.mxu0 %v503
    %622 = vmatprep.subr.mxu0 0.0
    %623 = vmatpush1.msra.mxu0 %v502
    %624 = vmatprep.subr.mxu0 0.0
    %625 = vmatpush2.msra.mxu0 0.0
    %626 = vmatprep.subr.mxu0 0.0
    %627 = vmatpush2.msra.mxu0 0.0
    %628 = vmatprep.subr.mxu0 0.0
    %629 = vmatpush2.msra.mxu0 0.0
    %630 = vmatprep.subr.mxu0 0.0
    %631 = vmatpush2.msra.mxu0 0.0
    %632 = vmatprep.subr.mxu0 0.0
    %633 = vmatpush2.msra.mxu0 0.0
    %634 = vmatprep.subr.mxu0 0.0
    %635 = vmatpush2.msra.mxu0 0.0
    %636 = vmatprep.subr.mxu0 0.0
    %637 = vmatpush2.msra.mxu0 0.0
    %638 = vmatprep.subr.mxu0 0.0
    %639 = vmatpush2.msra.mxu0 0.0
    %640 = vmatprep.subr.mxu0 0.0
    %641 = vmatpush2.msra.mxu0 0.0
    %642 = vmatprep.subr.mxu0 0.0
    %643 = vmatpush2.msra.mxu0 0.0
    %644 = vmatprep.subr.mxu0 0.0
    %645 = vmatpush2.msra.mxu0 0.0
    %646 = vmatprep.subr.mxu0 0.0
    %647 = vmatpush2.msra.mxu0 0.0
    %648 = vmatprep.subr.mxu0 0.0
    %649 = vmatpush2.msra.mxu0 0.0
    %650 = vmatprep.subr.mxu0 0.0
    %651 = vmatpush2.msra.mxu0 0.0
    %652 = vmatprep.subr.mxu0 0.0
    %653 = vmatpush2.msra.mxu0 0.0
    %654 = vmatprep.subr.mxu0 0.0
    %655 = vmatpush2.msra.mxu0 0.0
    %656 = vmatprep.mubr.f32.mxu0 0.0
    %657 = vmatmul.mubr.f32.gmra.mxu0 %v197
    %v658 = vpop.f32.mrf.mxu0
    %v659 = vadd.f32 %v574, %v658
    %v660 = vpop.f32.mrf.mxu0
    %661 = vmatprep.mubr.f32.mxu0 0.0
    %662 = vmatmul.mubr.f32.gmra.mxu0 %v200
    %v663 = vpop.f32.mrf.mxu0
    %v664 = vadd.f32 %v579, %v663
    %v665 = vpop.f32.mrf.mxu0
    %666 = vmatprep.mubr.f32.mxu0 0.0
    %667 = vmatmul.mubr.f32.gmra.mxu0 %v203
    %v668 = vpop.f32.mrf.mxu0
    %v669 = vadd.f32 %v584, %v668
    %v670 = vpop.f32.mrf.mxu0
    %671 = vmatprep.mubr.f32.mxu0 0.0
    %672 = vmatmul.mubr.f32.gmra.mxu0 %v206
    %v673 = vpop.f32.mrf.mxu0
    %v674 = vadd.f32 %v589, %v673
    %v675 = vpop.f32.mrf.mxu0
    %676 = vdwg.mxu0
    %s677 = scalar_lea.vmem [#allocation5], 96
    %v678 = vld [vmem:[%s677] sm:$0xff]
    %v679 = vld [vmem:[%s677 + $0x8] sm:$0xff]
    %680 = vmatprep.subr.mxu0 0.0
    %681 = vmatpush1.msra.mxu0 0.0
    %682 = vmatprep.subr.mxu0 0.0
    %683 = vmatpush1.msra.mxu0 0.0
    %684 = vmatprep.subr.mxu0 0.0
    %685 = vmatpush1.msra.mxu0 0.0
    %686 = vmatprep.subr.mxu0 0.0
    %687 = vmatpush1.msra.mxu0 0.0
    %688 = vmatprep.subr.mxu0 0.0
    %689 = vmatpush1.msra.mxu0 0.0
    %690 = vmatprep.subr.mxu0 0.0
    %691 = vmatpush1.msra.mxu0 0.0
    %692 = vmatprep.subr.mxu0 0.0
    %693 = vmatpush1.msra.mxu0 0.0
    %694 = vmatprep.subr.mxu0 0.0
    %695 = vmatpush1.msra.mxu0 0.0
    %696 = vmatprep.subr.mxu0 0.0
    %697 = vmatpush1.msra.mxu0 0.0
    %698 = vmatprep.subr.mxu0 0.0
    %699 = vmatpush1.msra.mxu0 0.0
    %700 = vmatprep.subr.mxu0 0.0
    %701 = vmatpush1.msra.mxu0 0.0
    %702 = vmatprep.subr.mxu0 0.0
    %703 = vmatpush1.msra.mxu0 0.0
    %704 = vmatprep.subr.mxu0 0.0
    %705 = vmatpush1.msra.mxu0 0.0
    %706 = vmatprep.subr.mxu0 0.0
    %707 = vmatpush1.msra.mxu0 0.0
    %708 = vmatprep.subr.mxu0 0.0
    %709 = vmatpush1.msra.mxu0 %v679
    %710 = vmatprep.subr.mxu0 0.0
    %711 = vmatpush1.msra.mxu0 %v678
    %712 = vmatprep.subr.mxu0 0.0
    %713 = vmatpush2.msra.mxu0 0.0
    %714 = vmatprep.subr.mxu0 0.0
    %715 = vmatpush2.msra.mxu0 0.0
    %716 = vmatprep.subr.mxu0 0.0
    %717 = vmatpush2.msra.mxu0 0.0
    %718 = vmatprep.subr.mxu0 0.0
    %719 = vmatpush2.msra.mxu0 0.0
    %720 = vmatprep.subr.mxu0 0.0
    %721 = vmatpush2.msra.mxu0 0.0
    %722 = vmatprep.subr.mxu0 0.0
    %723 = vmatpush2.msra.mxu0 0.0
    %724 = vmatprep.subr.mxu0 0.0
    %725 = vmatpush2.msra.mxu0 0.0
    %726 = vmatprep.subr.mxu0 0.0
    %727 = vmatpush2.msra.mxu0 0.0
    %728 = vmatprep.subr.mxu0 0.0
    %729 = vmatpush2.msra.mxu0 0.0
    %730 = vmatprep.subr.mxu0 0.0
    %731 = vmatpush2.msra.mxu0 0.0
    %732 = vmatprep.subr.mxu0 0.0
    %733 = vmatpush2.msra.mxu0 0.0
    %734 = vmatprep.subr.mxu0 0.0
    %735 = vmatpush2.msra.mxu0 0.0
    %736 = vmatprep.subr.mxu0 0.0
    %737 = vmatpush2.msra.mxu0 0.0
    %738 = vmatprep.subr.mxu0 0.0
    %739 = vmatpush2.msra.mxu0 0.0
    %740 = vmatprep.subr.mxu0 0.0
    %741 = vmatpush2.msra.mxu0 0.0
    %742 = vmatprep.subr.mxu0 0.0
    %743 = vmatpush2.msra.mxu0 0.0
    %744 = vmatprep.mubr.f32.mxu0 0.0
    %745 = vmatmul.mubr.f32.gmra.mxu0 %v297
    %v746 = vpop.f32.mrf.mxu0
    %v747 = vadd.f32 0.0, %v746
    %v748 = vpop.f32.mrf.mxu0
    %749 = vmatprep.mubr.f32.mxu0 0.0
    %750 = vmatmul.mubr.f32.gmra.mxu0 %v300
    %v751 = vpop.f32.mrf.mxu0
    %v752 = vadd.f32 0.0, %v751
    %v753 = vpop.f32.mrf.mxu0
    %754 = vmatprep.mubr.f32.mxu0 0.0
    %755 = vmatmul.mubr.f32.gmra.mxu0 %v303
    %v756 = vpop.f32.mrf.mxu0
    %v757 = vadd.f32 0.0, %v756
    %v758 = vpop.f32.mrf.mxu0
    %759 = vmatprep.mubr.f32.mxu0 0.0
    %760 = vmatmul.mubr.f32.gmra.mxu0 %v306
    %v761 = vpop.f32.mrf.mxu0
    %v762 = vadd.f32 0.0, %v761
    %v763 = vpop.f32.mrf.mxu0
    %764 = vdwg.mxu0
    %v765 = vadd.f32 %v659, %v747
    %v766 = vadd.f32 %v664, %v752
    %v767 = vadd.f32 %v669, %v757
    %v768 = vadd.f32 %v674, %v762
    %s769 = scalar_lea.vmem [#allocation5], 112
    %v770 = vld [vmem:[%s769] sm:$0xff]
    %v771 = vld [vmem:[%s769 + $0x8] sm:$0xff]
    %772 = vmatprep.subr.mxu0 0.0
    %773 = vmatpush1.msra.mxu0 0.0
    %774 = vmatprep.subr.mxu0 0.0
    %775 = vmatpush1.msra.mxu0 0.0
    %776 = vmatprep.subr.mxu0 0.0
    %777 = vmatpush1.msra.mxu0 0.0
    %778 = vmatprep.subr.mxu0 0.0
    %779 = vmatpush1.msra.mxu0 0.0
    %780 = vmatprep.subr.mxu0 0.0
    %781 = vmatpush1.msra.mxu0 0.0
    %782 = vmatprep.subr.mxu0 0.0
    %783 = vmatpush1.msra.mxu0 0.0
    %784 = vmatprep.subr.mxu0 0.0
    %785 = vmatpush1.msra.mxu0 0.0
    %786 = vmatprep.subr.mxu0 0.0
    %787 = vmatpush1.msra.mxu0 0.0
    %788 = vmatprep.subr.mxu0 0.0
    %789 = vmatpush1.msra.mxu0 0.0
    %790 = vmatprep.subr.mxu0 0.0
    %791 = vmatpush1.msra.mxu0 0.0
    %792 = vmatprep.subr.mxu0 0.0
    %793 = vmatpush1.msra.mxu0 0.0
    %794 = vmatprep.subr.mxu0 0.0
    %795 = vmatpush1.msra.mxu0 0.0
    %796 = vmatprep.subr.mxu0 0.0
    %797 = vmatpush1.msra.mxu0 0.0
    %798 = vmatprep.subr.mxu0 0.0
    %799 = vmatpush1.msra.mxu0 0.0
    %800 = vmatprep.subr.mxu0 0.0
    %801 = vmatpush1.msra.mxu0 %v771
    %802 = vmatprep.subr.mxu0 0.0
    %803 = vmatpush1.msra.mxu0 %v770
    %804 = vmatprep.subr.mxu0 0.0
    %805 = vmatpush2.msra.mxu0 0.0
    %806 = vmatprep.subr.mxu0 0.0
    %807 = vmatpush2.msra.mxu0 0.0
    %808 = vmatprep.subr.mxu0 0.0
    %809 = vmatpush2.msra.mxu0 0.0
    %810 = vmatprep.subr.mxu0 0.0
    %811 = vmatpush2.msra.mxu0 0.0
    %812 = vmatprep.subr.mxu0 0.0
    %813 = vmatpush2.msra.mxu0 0.0
    %814 = vmatprep.subr.mxu0 0.0
    %815 = vmatpush2.msra.mxu0 0.0
    %816 = vmatprep.subr.mxu0 0.0
    %817 = vmatpush2.msra.mxu0 0.0
    %818 = vmatprep.subr.mxu0 0.0
    %819 = vmatpush2.msra.mxu0 0.0
    %820 = vmatprep.subr.mxu0 0.0
    %821 = vmatpush2.msra.mxu0 0.0
    %822 = vmatprep.subr.mxu0 0.0
    %823 = vmatpush2.msra.mxu0 0.0
    %824 = vmatprep.subr.mxu0 0.0
    %825 = vmatpush2.msra.mxu0 0.0
    %826 = vmatprep.subr.mxu0 0.0
    %827 = vmatpush2.msra.mxu0 0.0
    %828 = vmatprep.subr.mxu0 0.0
    %829 = vmatpush2.msra.mxu0 0.0
    %830 = vmatprep.subr.mxu0 0.0
    %831 = vmatpush2.msra.mxu0 0.0
    %832 = vmatprep.subr.mxu0 0.0
    %833 = vmatpush2.msra.mxu0 0.0
    %834 = vmatprep.subr.mxu0 0.0
    %835 = vmatpush2.msra.mxu0 0.0
    %836 = vmatprep.mubr.f32.mxu0 0.0
    %837 = vmatmul.mubr.f32.gmra.mxu0 %v401
    %v838 = vpop.f32.mrf.mxu0
    %v839 = vadd.f32 0.0, %v838
    %v840 = vpop.f32.mrf.mxu0
    %841 = vmatprep.mubr.f32.mxu0 0.0
    %842 = vmatmul.mubr.f32.gmra.mxu0 %v404
    %v843 = vpop.f32.mrf.mxu0
    %v844 = vadd.f32 0.0, %v843
    %v845 = vpop.f32.mrf.mxu0
    %846 = vmatprep.mubr.f32.mxu0 0.0
    %847 = vmatmul.mubr.f32.gmra.mxu0 %v407
    %v848 = vpop.f32.mrf.mxu0
    %v849 = vadd.f32 0.0, %v848
    %v850 = vpop.f32.mrf.mxu0
    %851 = vmatprep.mubr.f32.mxu0 0.0
    %852 = vmatmul.mubr.f32.gmra.mxu0 %v410
    %v853 = vpop.f32.mrf.mxu0
    %v854 = vadd.f32 0.0, %v853
    %v855 = vpop.f32.mrf.mxu0
    %856 = vdwg.mxu0
    %v857 = vadd.f32 %v765, %v839
    %v858 = vadd.f32 %v766, %v844
    %v859 = vadd.f32 %v767, %v849
    %v860 = vadd.f32 %v768, %v854
    %s861 = scalar_lea.vmem [#allocation5], 128
    %v862 = vld [vmem:[%s861] sm:$0xff]
    %v863 = vld [vmem:[%s861 + $0x8] sm:$0xff]
    %s864 = scalar_lea.vmem [#allocation5], 144
    %v865 = vld [vmem:[%s864] sm:$0xff]
    %v866 = vld [vmem:[%s864 + $0x8] sm:$0xff]
    %867 = vmatprep.subr.mxu0 0.0
    %868 = vmatpush1.msra.mxu0 0.0
    %869 = vmatprep.subr.mxu0 0.0
    %870 = vmatpush1.msra.mxu0 0.0
    %871 = vmatprep.subr.mxu0 0.0
    %872 = vmatpush1.msra.mxu0 0.0
    %873 = vmatprep.subr.mxu0 0.0
    %874 = vmatpush1.msra.mxu0 0.0
    %875 = vmatprep.subr.mxu0 0.0
    %876 = vmatpush1.msra.mxu0 0.0
    %877 = vmatprep.subr.mxu0 0.0
    %878 = vmatpush1.msra.mxu0 0.0
    %879 = vmatprep.subr.mxu0 0.0
    %880 = vmatpush1.msra.mxu0 0.0
    %881 = vmatprep.subr.mxu0 0.0
    %882 = vmatpush1.msra.mxu0 0.0
    %883 = vmatprep.subr.mxu0 0.0
    %884 = vmatpush1.msra.mxu0 0.0
    %885 = vmatprep.subr.mxu0 0.0
    %886 = vmatpush1.msra.mxu0 0.0
    %887 = vmatprep.subr.mxu0 0.0
    %888 = vmatpush1.msra.mxu0 0.0
    %889 = vmatprep.subr.mxu0 0.0
    %890 = vmatpush1.msra.mxu0 0.0
    %891 = vmatprep.subr.mxu0 0.0
    %892 = vmatpush1.msra.mxu0 0.0
    %893 = vmatprep.subr.mxu0 0.0
    %894 = vmatpush1.msra.mxu0 0.0
    %895 = vmatprep.subr.mxu0 0.0
    %896 = vmatpush1.msra.mxu0 %v866
    %897 = vmatprep.subr.mxu0 0.0
    %898 = vmatpush1.msra.mxu0 %v865
    %899 = vmatprep.subr.mxu0 0.0
    %900 = vmatpush2.msra.mxu0 0.0
    %901 = vmatprep.subr.mxu0 0.0
    %902 = vmatpush2.msra.mxu0 0.0
    %903 = vmatprep.subr.mxu0 0.0
    %904 = vmatpush2.msra.mxu0 0.0
    %905 = vmatprep.subr.mxu0 0.0
    %906 = vmatpush2.msra.mxu0 0.0
    %907 = vmatprep.subr.mxu0 0.0
    %908 = vmatpush2.msra.mxu0 0.0
    %909 = vmatprep.subr.mxu0 0.0
    %910 = vmatpush2.msra.mxu0 0.0
    %911 = vmatprep.subr.mxu0 0.0
    %912 = vmatpush2.msra.mxu0 0.0
    %913 = vmatprep.subr.mxu0 0.0
    %914 = vmatpush2.msra.mxu0 0.0
    %915 = vmatprep.subr.mxu0 0.0
    %916 = vmatpush2.msra.mxu0 0.0
    %917 = vmatprep.subr.mxu0 0.0
    %918 = vmatpush2.msra.mxu0 0.0
    %919 = vmatprep.subr.mxu0 0.0
    %920 = vmatpush2.msra.mxu0 0.0
    %921 = vmatprep.subr.mxu0 0.0
    %922 = vmatpush2.msra.mxu0 0.0
    %923 = vmatprep.subr.mxu0 0.0
    %924 = vmatpush2.msra.mxu0 0.0
    %925 = vmatprep.subr.mxu0 0.0
    %926 = vmatpush2.msra.mxu0 0.0
    %927 = vmatprep.subr.mxu0 0.0
    %928 = vmatpush2.msra.mxu0 0.0
    %929 = vmatprep.subr.mxu0 0.0
    %930 = vmatpush2.msra.mxu0 0.0
    %931 = vmatprep.mubr.f32.mxu0 0.0
    %932 = vmatmul.mubr.f32.gmra.mxu0 %v100
    %v933 = vpop.f32.mrf.mxu0
    %v934 = vadd.f32 0.0, %v933
    %v935 = vpop.f32.mrf.mxu0
    %936 = vmatprep.mubr.f32.mxu0 0.0
    %937 = vmatmul.mubr.f32.gmra.mxu0 %v103
    %v938 = vpop.f32.mrf.mxu0
    %v939 = vadd.f32 0.0, %v938
    %v940 = vpop.f32.mrf.mxu0
    %941 = vmatprep.mubr.f32.mxu0 0.0
    %942 = vmatmul.mubr.f32.gmra.mxu0 %v106
    %v943 = vpop.f32.mrf.mxu0
    %v944 = vadd.f32 0.0, %v943
    %v945 = vpop.f32.mrf.mxu0
    %946 = vmatprep.mubr.f32.mxu0 0.0
    %947 = vmatmul.mubr.f32.gmra.mxu0 %v109
    %v948 = vpop.f32.mrf.mxu0
    %v949 = vadd.f32 0.0, %v948
    %v950 = vpop.f32.mrf.mxu0
    %951 = vdwg.mxu0
    %952 = vmatprep.subr.mxu0 0.0
    %953 = vmatpush1.msra.mxu0 0.0
    %954 = vmatprep.subr.mxu0 0.0
    %955 = vmatpush1.msra.mxu0 0.0
    %956 = vmatprep.subr.mxu0 0.0
    %957 = vmatpush1.msra.mxu0 0.0
    %958 = vmatprep.subr.mxu0 0.0
    %959 = vmatpush1.msra.mxu0 0.0
    %960 = vmatprep.subr.mxu0 0.0
    %961 = vmatpush1.msra.mxu0 0.0
    %962 = vmatprep.subr.mxu0 0.0
    %963 = vmatpush1.msra.mxu0 0.0
    %964 = vmatprep.subr.mxu0 0.0
    %965 = vmatpush1.msra.mxu0 0.0
    %966 = vmatprep.subr.mxu0 0.0
    %967 = vmatpush1.msra.mxu0 0.0
    %968 = vmatprep.subr.mxu0 0.0
    %969 = vmatpush1.msra.mxu0 0.0
    %970 = vmatprep.subr.mxu0 0.0
    %971 = vmatpush1.msra.mxu0 0.0
    %972 = vmatprep.subr.mxu0 0.0
    %973 = vmatpush1.msra.mxu0 0.0
    %974 = vmatprep.subr.mxu0 0.0
    %975 = vmatpush1.msra.mxu0 0.0
    %976 = vmatprep.subr.mxu0 0.0
    %977 = vmatpush1.msra.mxu0 0.0
    %978 = vmatprep.subr.mxu0 0.0
    %979 = vmatpush1.msra.mxu0 0.0
    %980 = vmatprep.subr.mxu0 0.0
    %981 = vmatpush1.msra.mxu0 %v863
    %982 = vmatprep.subr.mxu0 0.0
    %983 = vmatpush1.msra.mxu0 %v862
    %984 = vmatprep.subr.mxu0 0.0
    %985 = vmatpush2.msra.mxu0 0.0
    %986 = vmatprep.subr.mxu0 0.0
    %987 = vmatpush2.msra.mxu0 0.0
    %988 = vmatprep.subr.mxu0 0.0
    %989 = vmatpush2.msra.mxu0 0.0
    %990 = vmatprep.subr.mxu0 0.0
    %991 = vmatpush2.msra.mxu0 0.0
    %992 = vmatprep.subr.mxu0 0.0
    %993 = vmatpush2.msra.mxu0 0.0
    %994 = vmatprep.subr.mxu0 0.0
    %995 = vmatpush2.msra.mxu0 0.0
    %996 = vmatprep.subr.mxu0 0.0
    %997 = vmatpush2.msra.mxu0 0.0
    %998 = vmatprep.subr.mxu0 0.0
    %999 = vmatpush2.msra.mxu0 0.0
    %1000 = vmatprep.subr.mxu0 0.0
    %1001 = vmatpush2.msra.mxu0 0.0
    %1002 = vmatprep.subr.mxu0 0.0
    %1003 = vmatpush2.msra.mxu0 0.0
    %1004 = vmatprep.subr.mxu0 0.0
    %1005 = vmatpush2.msra.mxu0 0.0
    %1006 = vmatprep.subr.mxu0 0.0
    %1007 = vmatpush2.msra.mxu0 0.0
    %1008 = vmatprep.subr.mxu0 0.0
    %1009 = vmatpush2.msra.mxu0 0.0
    %1010 = vmatprep.subr.mxu0 0.0
    %1011 = vmatpush2.msra.mxu0 0.0
    %1012 = vmatprep.subr.mxu0 0.0
    %1013 = vmatpush2.msra.mxu0 0.0
    %1014 = vmatprep.subr.mxu0 0.0
    %1015 = vmatpush2.msra.mxu0 0.0
    %1016 = vmatprep.mubr.f32.mxu0 0.0
    %1017 = vmatmul.mubr.f32.gmra.mxu0 %v197
    %v1018 = vpop.f32.mrf.mxu0
    %v1019 = vadd.f32 %v934, %v1018
    %v1020 = vpop.f32.mrf.mxu0
    %1021 = vmatprep.mubr.f32.mxu0 0.0
    %1022 = vmatmul.mubr.f32.gmra.mxu0 %v200
    %v1023 = vpop.f32.mrf.mxu0
    %v1024 = vadd.f32 %v939, %v1023
    %v1025 = vpop.f32.mrf.mxu0
    %1026 = vmatprep.mubr.f32.mxu0 0.0
    %1027 = vmatmul.mubr.f32.gmra.mxu0 %v203
    %v1028 = vpop.f32.mrf.mxu0
    %v1029 = vadd.f32 %v944, %v1028
    %v1030 = vpop.f32.mrf.mxu0
    %1031 = vmatprep.mubr.f32.mxu0 0.0
    %1032 = vmatmul.mubr.f32.gmra.mxu0 %v206
    %v1033 = vpop.f32.mrf.mxu0
    %v1034 = vadd.f32 %v949, %v1033
    %v1035 = vpop.f32.mrf.mxu0
    %1036 = vdwg.mxu0
    %s1037 = scalar_lea.vmem [#allocation5], 160
    %v1038 = vld [vmem:[%s1037] sm:$0xff]
    %v1039 = vld [vmem:[%s1037 + $0x8] sm:$0xff]
    %1040 = vmatprep.subr.mxu0 0.0
    %1041 = vmatpush1.msra.mxu0 0.0
    %1042 = vmatprep.subr.mxu0 0.0
    %1043 = vmatpush1.msra.mxu0 0.0
    %1044 = vmatprep.subr.mxu0 0.0
    %1045 = vmatpush1.msra.mxu0 0.0
    %1046 = vmatprep.subr.mxu0 0.0
    %1047 = vmatpush1.msra.mxu0 0.0
    %1048 = vmatprep.subr.mxu0 0.0
    %1049 = vmatpush1.msra.mxu0 0.0
    %1050 = vmatprep.subr.mxu0 0.0
    %1051 = vmatpush1.msra.mxu0 0.0
    %1052 = vmatprep.subr.mxu0 0.0
    %1053 = vmatpush1.msra.mxu0 0.0
    %1054 = vmatprep.subr.mxu0 0.0
    %1055 = vmatpush1.msra.mxu0 0.0
    %1056 = vmatprep.subr.mxu0 0.0
    %1057 = vmatpush1.msra.mxu0 0.0
    %1058 = vmatprep.subr.mxu0 0.0
    %1059 = vmatpush1.msra.mxu0 0.0
    %1060 = vmatprep.subr.mxu0 0.0
    %1061 = vmatpush1.msra.mxu0 0.0
    %1062 = vmatprep.subr.mxu0 0.0
    %1063 = vmatpush1.msra.mxu0 0.0
    %1064 = vmatprep.subr.mxu0 0.0
    %1065 = vmatpush1.msra.mxu0 0.0
    %1066 = vmatprep.subr.mxu0 0.0
    %1067 = vmatpush1.msra.mxu0 0.0
    %1068 = vmatprep.subr.mxu0 0.0
    %1069 = vmatpush1.msra.mxu0 %v1039
    %1070 = vmatprep.subr.mxu0 0.0
    %1071 = vmatpush1.msra.mxu0 %v1038
    %1072 = vmatprep.subr.mxu0 0.0
    %1073 = vmatpush2.msra.mxu0 0.0
    %1074 = vmatprep.subr.mxu0 0.0
    %1075 = vmatpush2.msra.mxu0 0.0
    %1076 = vmatprep.subr.mxu0 0.0
    %1077 = vmatpush2.msra.mxu0 0.0
    %1078 = vmatprep.subr.mxu0 0.0
    %1079 = vmatpush2.msra.mxu0 0.0
    %1080 = vmatprep.subr.mxu0 0.0
    %1081 = vmatpush2.msra.mxu0 0.0
    %1082 = vmatprep.subr.mxu0 0.0
    %1083 = vmatpush2.msra.mxu0 0.0
    %1084 = vmatprep.subr.mxu0 0.0
    %1085 = vmatpush2.msra.mxu0 0.0
    %1086 = vmatprep.subr.mxu0 0.0
    %1087 = vmatpush2.msra.mxu0 0.0
    %1088 = vmatprep.subr.mxu0 0.0
    %1089 = vmatpush2.msra.mxu0 0.0
    %1090 = vmatprep.subr.mxu0 0.0
    %1091 = vmatpush2.msra.mxu0 0.0
    %1092 = vmatprep.subr.mxu0 0.0
    %1093 = vmatpush2.msra.mxu0 0.0
    %1094 = vmatprep.subr.mxu0 0.0
    %1095 = vmatpush2.msra.mxu0 0.0
    %1096 = vmatprep.subr.mxu0 0.0
    %1097 = vmatpush2.msra.mxu0 0.0
    %1098 = vmatprep.subr.mxu0 0.0
    %1099 = vmatpush2.msra.mxu0 0.0
    %1100 = vmatprep.subr.mxu0 0.0
    %1101 = vmatpush2.msra.mxu0 0.0
    %1102 = vmatprep.subr.mxu0 0.0
    %1103 = vmatpush2.msra.mxu0 0.0
    %1104 = vmatprep.mubr.f32.mxu0 0.0
    %1105 = vmatmul.mubr.f32.gmra.mxu0 %v297
    %v1106 = vpop.f32.mrf.mxu0
    %v1107 = vadd.f32 0.0, %v1106
    %v1108 = vpop.f32.mrf.mxu0
    %1109 = vmatprep.mubr.f32.mxu0 0.0
    %1110 = vmatmul.mubr.f32.gmra.mxu0 %v300
    %v1111 = vpop.f32.mrf.mxu0
    %v1112 = vadd.f32 0.0, %v1111
    %v1113 = vpop.f32.mrf.mxu0
    %1114 = vmatprep.mubr.f32.mxu0 0.0
    %1115 = vmatmul.mubr.f32.gmra.mxu0 %v303
    %v1116 = vpop.f32.mrf.mxu0
    %v1117 = vadd.f32 0.0, %v1116
    %v1118 = vpop.f32.mrf.mxu0
    %1119 = vmatprep.mubr.f32.mxu0 0.0
    %1120 = vmatmul.mubr.f32.gmra.mxu0 %v306
    %v1121 = vpop.f32.mrf.mxu0
    %v1122 = vadd.f32 0.0, %v1121
    %v1123 = vpop.f32.mrf.mxu0
    %1124 = vdwg.mxu0
    %v1125 = vadd.f32 %v1019, %v1107
    %v1126 = vadd.f32 %v1024, %v1112
    %v1127 = vadd.f32 %v1029, %v1117
    %v1128 = vadd.f32 %v1034, %v1122
    %s1129 = scalar_lea.vmem [#allocation5], 176
    %v1130 = vld [vmem:[%s1129] sm:$0xff]
    %v1131 = vld [vmem:[%s1129 + $0x8] sm:$0xff]
    %1132 = vmatprep.subr.mxu0 0.0
    %1133 = vmatpush1.msra.mxu0 0.0
    %1134 = vmatprep.subr.mxu0 0.0
    %1135 = vmatpush1.msra.mxu0 0.0
    %1136 = vmatprep.subr.mxu0 0.0
    %1137 = vmatpush1.msra.mxu0 0.0
    %1138 = vmatprep.subr.mxu0 0.0
    %1139 = vmatpush1.msra.mxu0 0.0
    %1140 = vmatprep.subr.mxu0 0.0
    %1141 = vmatpush1.msra.mxu0 0.0
    %1142 = vmatprep.subr.mxu0 0.0
    %1143 = vmatpush1.msra.mxu0 0.0
    %1144 = vmatprep.subr.mxu0 0.0
    %1145 = vmatpush1.msra.mxu0 0.0
    %1146 = vmatprep.subr.mxu0 0.0
    %1147 = vmatpush1.msra.mxu0 0.0
    %1148 = vmatprep.subr.mxu0 0.0
    %1149 = vmatpush1.msra.mxu0 0.0
    %1150 = vmatprep.subr.mxu0 0.0
    %1151 = vmatpush1.msra.mxu0 0.0
    %1152 = vmatprep.subr.mxu0 0.0
    %1153 = vmatpush1.msra.mxu0 0.0
    %1154 = vmatprep.subr.mxu0 0.0
    %1155 = vmatpush1.msra.mxu0 0.0
    %1156 = vmatprep.subr.mxu0 0.0
    %1157 = vmatpush1.msra.mxu0 0.0
    %1158 = vmatprep.subr.mxu0 0.0
    %1159 = vmatpush1.msra.mxu0 0.0
    %1160 = vmatprep.subr.mxu0 0.0
    %1161 = vmatpush1.msra.mxu0 %v1131
    %1162 = vmatprep.subr.mxu0 0.0
    %1163 = vmatpush1.msra.mxu0 %v1130
    %1164 = vmatprep.subr.mxu0 0.0
    %1165 = vmatpush2.msra.mxu0 0.0
    %1166 = vmatprep.subr.mxu0 0.0
    %1167 = vmatpush2.msra.mxu0 0.0
    %1168 = vmatprep.subr.mxu0 0.0
    %1169 = vmatpush2.msra.mxu0 0.0
    %1170 = vmatprep.subr.mxu0 0.0
    %1171 = vmatpush2.msra.mxu0 0.0
    %1172 = vmatprep.subr.mxu0 0.0
    %1173 = vmatpush2.msra.mxu0 0.0
    %1174 = vmatprep.subr.mxu0 0.0
    %1175 = vmatpush2.msra.mxu0 0.0
    %1176 = vmatprep.subr.mxu0 0.0
    %1177 = vmatpush2.msra.mxu0 0.0
    %1178 = vmatprep.subr.mxu0 0.0
    %1179 = vmatpush2.msra.mxu0 0.0
    %1180 = vmatprep.subr.mxu0 0.0
    %1181 = vmatpush2.msra.mxu0 0.0
    %1182 = vmatprep.subr.mxu0 0.0
    %1183 = vmatpush2.msra.mxu0 0.0
    %1184 = vmatprep.subr.mxu0 0.0
    %1185 = vmatpush2.msra.mxu0 0.0
    %1186 = vmatprep.subr.mxu0 0.0
    %1187 = vmatpush2.msra.mxu0 0.0
    %1188 = vmatprep.subr.mxu0 0.0
    %1189 = vmatpush2.msra.mxu0 0.0
    %1190 = vmatprep.subr.mxu0 0.0
    %1191 = vmatpush2.msra.mxu0 0.0
    %1192 = vmatprep.subr.mxu0 0.0
    %1193 = vmatpush2.msra.mxu0 0.0
    %1194 = vmatprep.subr.mxu0 0.0
    %1195 = vmatpush2.msra.mxu0 0.0
    %1196 = vmatprep.mubr.f32.mxu0 0.0
    %1197 = vmatmul.mubr.f32.gmra.mxu0 %v401
    %v1198 = vpop.f32.mrf.mxu0
    %v1199 = vadd.f32 0.0, %v1198
    %v1200 = vpop.f32.mrf.mxu0
    %1201 = vmatprep.mubr.f32.mxu0 0.0
    %1202 = vmatmul.mubr.f32.gmra.mxu0 %v404
    %v1203 = vpop.f32.mrf.mxu0
    %v1204 = vadd.f32 0.0, %v1203
    %v1205 = vpop.f32.mrf.mxu0
    %1206 = vmatprep.mubr.f32.mxu0 0.0
    %1207 = vmatmul.mubr.f32.gmra.mxu0 %v407
    %v1208 = vpop.f32.mrf.mxu0
    %v1209 = vadd.f32 0.0, %v1208
    %v1210 = vpop.f32.mrf.mxu0
    %1211 = vmatprep.mubr.f32.mxu0 0.0
    %1212 = vmatmul.mubr.f32.gmra.mxu0 %v410
    %v1213 = vpop.f32.mrf.mxu0
    %v1214 = vadd.f32 0.0, %v1213
    %v1215 = vpop.f32.mrf.mxu0
    %1216 = vdwg.mxu0
    %v1217 = vadd.f32 %v1125, %v1199
    %v1218 = vadd.f32 %v1126, %v1204
    %v1219 = vadd.f32 %v1127, %v1209
    %v1220 = vadd.f32 %v1128, %v1214
    %v1221 = vld [vmem:[%s2] sm:$0x1]
    %v1222 = vrot.slane %v497, 7
    %v1223 = vrot.slane %v498, 7
    %v1224 = vrot.slane %v499, 7
    %v1225 = vrot.slane %v500, 7
    %vm1226 = vcmp.lt.s32.totalorder %v79, 1
    %v1227 = vsel %vm1226, %v1224, %v1225
    %v1228 = vsel %vm1226, %v1223, %v1224
    %v1229 = vsel %vm1226, %v1222, %v1223
    %v1230 = vsel %vm1226, %v1225, %v1222
    %v1231 = vmul.f32 %v1230, %v85
    %v1232 = vmul.f32 %v1229, %v86
    %v1233 = vmul.f32 %v1228, %v85
    %v1234 = vmul.f32 %v1227, %v86
    %v1235 = vadd.f32 %v1231, %v857
    %v1236 = vadd.f32 %v1232, %v858
    %v1237 = vadd.f32 %v1233, %v859
    %v1238 = vadd.f32 %v1234, %v860
    %v1239 = vrot.slane %v1217, 1
    %v1240 = vrot.slane %v1218, 1
    %v1241 = vrot.slane %v1219, 1
    %v1242 = vrot.slane %v1220, 1
    %vm1243 = vcmp.lt.s32.totalorder %v79, 7
    %v1244 = vsel %vm1243, %v1241, %v1242
    %v1245 = vsel %vm1243, %v1240, %v1241
    %v1246 = vsel %vm1243, %v1239, %v1240
    %v1247 = vsel %vm1243, %v1242, %v1239
    %v1248 = vmul.f32 %v1246, %v91
    %v1249 = vmul.f32 %v1245, %v92
    %v1250 = vmul.f32 %v1244, %v91
    %v1251 = vmul.f32 %v1247, %v92
    %v1252 = vadd.f32 %v1235, %v1248
    %v1253 = vadd.f32 %v1236, %v1249
    %v1254 = vadd.f32 %v1237, %v1250
    %v1255 = vadd.f32 %v1238, %v1251
    %v1257 = vlaneseq
    %v1258 = vshrl.u32 %v1257, 7
    %v1259 = vsub.s32 0, %v1258
    %v1260 = vrot.slane %v1221, %v1259
    %v1262 = vadd.f32 %v1252, %v1260
    %v1263 = vadd.f32 %v1253, %v1260
    %v1264 = vadd.f32 %v1254, %v1260
    %v1265 = vadd.f32 %v1255, %v1260
    %v1266 = vld [vmem:[#allocation7] sm:$0xff]
    %v1267 = vld [vmem:[#allocation7 + $0x8] sm:$0xff]
    %v1268 = vld [vmem:[#allocation7 + $0x10] sm:$0xff]
    %v1269 = vld [vmem:[#allocation7 + $0x18] sm:$0xff]
    %v1270 = vld [vmem:[#allocation7 + $0x20] sm:$0xff]
    %v1271 = vld [vmem:[#allocation7 + $0x28] sm:$0xff]
    %v1272 = vld [vmem:[#allocation7 + $0x30] sm:$0xff]
    %v1273 = vld [vmem:[#allocation7 + $0x38] sm:$0xff]
    %v1274 = vld [vmem:[#allocation7 + $0x40] sm:$0xff]
    %v1275 = vld [vmem:[#allocation7 + $0x48] sm:$0xff]
    %v1276 = vld [vmem:[#allocation7 + $0x50] sm:$0xff]
    %v1277 = vld [vmem:[#allocation7 + $0x58] sm:$0xff]
    %v1278 = vld [vmem:[#allocation7 + $0x60] sm:$0xff]
    %v1279 = vld [vmem:[#allocation7 + $0x68] sm:$0xff]
    %v1280 = vld [vmem:[#allocation7 + $0x70] sm:$0xff]
    %v1281 = vld [vmem:[#allocation7 + $0x78] sm:$0xff]
    %1282 = vmatprep.subr.mxu0 0.0
    %1283 = vmatpush1.msra.mxu0 %v1281
    %1284 = vmatprep.subr.mxu0 0.0
    %1285 = vmatpush1.msra.mxu0 %v1280
    %1286 = vmatprep.subr.mxu0 0.0
    %1287 = vmatpush1.msra.mxu0 %v1279
    %1288 = vmatprep.subr.mxu0 0.0
    %1289 = vmatpush1.msra.mxu0 %v1278
    %1290 = vmatprep.subr.mxu0 0.0
    %1291 = vmatpush1.msra.mxu0 %v1277
    %1292 = vmatprep.subr.mxu0 0.0
    %1293 = vmatpush1.msra.mxu0 %v1276
    %1294 = vmatprep.subr.mxu0 0.0
    %1295 = vmatpush1.msra.mxu0 %v1275
    %1296 = vmatprep.subr.mxu0 0.0
    %1297 = vmatpush1.msra.mxu0 %v1274
    %1298 = vmatprep.subr.mxu0 0.0
    %1299 = vmatpush1.msra.mxu0 %v1273
    %1300 = vmatprep.subr.mxu0 0.0
    %1301 = vmatpush1.msra.mxu0 %v1272
    %1302 = vmatprep.subr.mxu0 0.0
    %1303 = vmatpush1.msra.mxu0 %v1271
    %1304 = vmatprep.subr.mxu0 0.0
    %1305 = vmatpush1.msra.mxu0 %v1270
    %1306 = vmatprep.subr.mxu0 0.0
    %1307 = vmatpush1.msra.mxu0 %v1269
    %1308 = vmatprep.subr.mxu0 0.0
    %1309 = vmatpush1.msra.mxu0 %v1268
    %1310 = vmatprep.subr.mxu0 0.0
    %1311 = vmatpush1.msra.mxu0 %v1267
    %1312 = vmatprep.subr.mxu0 0.0
    %1313 = vmatpush1.msra.mxu0 %v1266
    %1314 = vmatprep.subr.mxu0 0.0
    %1315 = vmatpush2.msra.mxu0 0.0
    %1316 = vmatprep.subr.mxu0 0.0
    %1317 = vmatpush2.msra.mxu0 0.0
    %1318 = vmatprep.subr.mxu0 0.0
    %1319 = vmatpush2.msra.mxu0 0.0
    %1320 = vmatprep.subr.mxu0 0.0
    %1321 = vmatpush2.msra.mxu0 0.0
    %1322 = vmatprep.subr.mxu0 0.0
    %1323 = vmatpush2.msra.mxu0 0.0
    %1324 = vmatprep.subr.mxu0 0.0
    %1325 = vmatpush2.msra.mxu0 0.0
    %1326 = vmatprep.subr.mxu0 0.0
    %1327 = vmatpush2.msra.mxu0 0.0
    %1328 = vmatprep.subr.mxu0 0.0
    %1329 = vmatpush2.msra.mxu0 0.0
    %1330 = vmatprep.subr.mxu0 0.0
    %1331 = vmatpush2.msra.mxu0 0.0
    %1332 = vmatprep.subr.mxu0 0.0
    %1333 = vmatpush2.msra.mxu0 0.0
    %1334 = vmatprep.subr.mxu0 0.0
    %1335 = vmatpush2.msra.mxu0 0.0
    %1336 = vmatprep.subr.mxu0 0.0
    %1337 = vmatpush2.msra.mxu0 0.0
    %1338 = vmatprep.subr.mxu0 0.0
    %1339 = vmatpush2.msra.mxu0 0.0
    %1340 = vmatprep.subr.mxu0 0.0
    %1341 = vmatpush2.msra.mxu0 0.0
    %1342 = vmatprep.subr.mxu0 0.0
    %1343 = vmatpush2.msra.mxu0 0.0
    %1344 = vmatprep.subr.mxu0 0.0
    %1345 = vmatpush2.msra.mxu0 0.0
    %1346 = vmatprep.mubr.f32.mxu0 0.0
    %1347 = vmatmul.mubr.f32.gmra.mxu0 %v1262
    %v1348 = vpop.f32.mrf.mxu0
    %v1349 = vadd.f32 0.0, %v1348
    %v1350 = vpop.f32.mrf.mxu0
    %1351 = vmatprep.mubr.f32.mxu0 0.0
    %1352 = vmatmul.mubr.f32.gmra.mxu0 %v1263
    %v1353 = vpop.f32.mrf.mxu0
    %v1354 = vadd.f32 0.0, %v1353
    %v1355 = vpop.f32.mrf.mxu0
    %1356 = vmatprep.mubr.f32.mxu0 0.0
    %1357 = vmatmul.mubr.f32.gmra.mxu0 %v1264
    %v1358 = vpop.f32.mrf.mxu0
    %v1359 = vadd.f32 0.0, %v1358
    %v1360 = vpop.f32.mrf.mxu0
    %1361 = vmatprep.mubr.f32.mxu0 0.0
    %1362 = vmatmul.mubr.f32.gmra.mxu0 %v1265
    %v1363 = vpop.f32.mrf.mxu0
    %v1364 = vadd.f32 0.0, %v1363
    %v1365 = vpop.f32.mrf.mxu0
    %1366 = vdwg.mxu0
    %s1367 = scalar_lea.vmem [#allocation7], 128
    %v1368 = vld [vmem:[%s1367] sm:$0xff]
    %v1369 = vld [vmem:[%s1367 + $0x8] sm:$0xff]
    %v1370 = vld [vmem:[%s1367 + $0x10] sm:$0xff]
    %v1371 = vld [vmem:[%s1367 + $0x18] sm:$0xff]
    %v1372 = vld [vmem:[%s1367 + $0x20] sm:$0xff]
    %v1373 = vld [vmem:[%s1367 + $0x28] sm:$0xff]
    %v1374 = vld [vmem:[%s1367 + $0x30] sm:$0xff]
    %v1375 = vld [vmem:[%s1367 + $0x38] sm:$0xff]
    %v1376 = vld [vmem:[%s1367 + $0x40] sm:$0xff]
    %v1377 = vld [vmem:[%s1367 + $0x48] sm:$0xff]
    %v1378 = vld [vmem:[%s1367 + $0x50] sm:$0xff]
    %v1379 = vld [vmem:[%s1367 + $0x58] sm:$0xff]
    %v1380 = vld [vmem:[%s1367 + $0x60] sm:$0xff]
    %v1381 = vld [vmem:[%s1367 + $0x68] sm:$0xff]
    %v1382 = vld [vmem:[%s1367 + $0x70] sm:$0xff]
    %v1383 = vld [vmem:[%s1367 + $0x78] sm:$0xff]
    %1384 = vmatprep.subr.mxu0 0.0
    %1385 = vmatpush1.msra.mxu0 %v1383
    %1386 = vmatprep.subr.mxu0 0.0
    %1387 = vmatpush1.msra.mxu0 %v1382
    %1388 = vmatprep.subr.mxu0 0.0
    %1389 = vmatpush1.msra.mxu0 %v1381
    %1390 = vmatprep.subr.mxu0 0.0
    %1391 = vmatpush1.msra.mxu0 %v1380
    %1392 = vmatprep.subr.mxu0 0.0
    %1393 = vmatpush1.msra.mxu0 %v1379
    %1394 = vmatprep.subr.mxu0 0.0
    %1395 = vmatpush1.msra.mxu0 %v1378
    %1396 = vmatprep.subr.mxu0 0.0
    %1397 = vmatpush1.msra.mxu0 %v1377
    %1398 = vmatprep.subr.mxu0 0.0
    %1399 = vmatpush1.msra.mxu0 %v1376
    %1400 = vmatprep.subr.mxu0 0.0
    %1401 = vmatpush1.msra.mxu0 %v1375
    %1402 = vmatprep.subr.mxu0 0.0
    %1403 = vmatpush1.msra.mxu0 %v1374
    %1404 = vmatprep.subr.mxu0 0.0
    %1405 = vmatpush1.msra.mxu0 %v1373
    %1406 = vmatprep.subr.mxu0 0.0
    %1407 = vmatpush1.msra.mxu0 %v1372
    %1408 = vmatprep.subr.mxu0 0.0
    %1409 = vmatpush1.msra.mxu0 %v1371
    %1410 = vmatprep.subr.mxu0 0.0
    %1411 = vmatpush1.msra.mxu0 %v1370
    %1412 = vmatprep.subr.mxu0 0.0
    %1413 = vmatpush1.msra.mxu0 %v1369
    %1414 = vmatprep.subr.mxu0 0.0
    %1415 = vmatpush1.msra.mxu0 %v1368
    %1416 = vmatprep.subr.mxu0 0.0
    %1417 = vmatpush2.msra.mxu0 0.0
    %1418 = vmatprep.subr.mxu0 0.0
    %1419 = vmatpush2.msra.mxu0 0.0
    %1420 = vmatprep.subr.mxu0 0.0
    %1421 = vmatpush2.msra.mxu0 0.0
    %1422 = vmatprep.subr.mxu0 0.0
    %1423 = vmatpush2.msra.mxu0 0.0
    %1424 = vmatprep.subr.mxu0 0.0
    %1425 = vmatpush2.msra.mxu0 0.0
    %1426 = vmatprep.subr.mxu0 0.0
    %1427 = vmatpush2.msra.mxu0 0.0
    %1428 = vmatprep.subr.mxu0 0.0
    %1429 = vmatpush2.msra.mxu0 0.0
    %1430 = vmatprep.subr.mxu0 0.0
    %1431 = vmatpush2.msra.mxu0 0.0
    %1432 = vmatprep.subr.mxu0 0.0
    %1433 = vmatpush2.msra.mxu0 0.0
    %1434 = vmatprep.subr.mxu0 0.0
    %1435 = vmatpush2.msra.mxu0 0.0
    %1436 = vmatprep.subr.mxu0 0.0
    %1437 = vmatpush2.msra.mxu0 0.0
    %1438 = vmatprep.subr.mxu0 0.0
    %1439 = vmatpush2.msra.mxu0 0.0
    %1440 = vmatprep.subr.mxu0 0.0
    %1441 = vmatpush2.msra.mxu0 0.0
    %1442 = vmatprep.subr.mxu0 0.0
    %1443 = vmatpush2.msra.mxu0 0.0
    %1444 = vmatprep.subr.mxu0 0.0
    %1445 = vmatpush2.msra.mxu0 0.0
    %1446 = vmatprep.subr.mxu0 0.0
    %1447 = vmatpush2.msra.mxu0 0.0
    %1448 = vmatprep.mubr.f32.mxu0 0.0
    %1449 = vmatmul.mubr.f32.gmra.mxu0 %v1262
    %v1450 = vpop.f32.mrf.mxu0
    %v1451 = vadd.f32 0.0, %v1450
    %v1452 = vpop.f32.mrf.mxu0
    %1453 = vmatprep.mubr.f32.mxu0 0.0
    %1454 = vmatmul.mubr.f32.gmra.mxu0 %v1263
    %v1455 = vpop.f32.mrf.mxu0
    %v1456 = vadd.f32 0.0, %v1455
    %v1457 = vpop.f32.mrf.mxu0
    %1458 = vmatprep.mubr.f32.mxu0 0.0
    %1459 = vmatmul.mubr.f32.gmra.mxu0 %v1264
    %v1460 = vpop.f32.mrf.mxu0
    %v1461 = vadd.f32 0.0, %v1460
    %v1462 = vpop.f32.mrf.mxu0
    %1463 = vmatprep.mubr.f32.mxu0 0.0
    %1464 = vmatmul.mubr.f32.gmra.mxu0 %v1265
    %v1465 = vpop.f32.mrf.mxu0
    %v1466 = vadd.f32 0.0, %v1465
    %v1467 = vpop.f32.mrf.mxu0
    %1468 = vdwg.mxu0
    %s1469 = scalar_lea.vmem [#allocation7], 256
    %v1470 = vld [vmem:[%s1469] sm:$0xff]
    %v1471 = vld [vmem:[%s1469 + $0x8] sm:$0xff]
    %v1472 = vld [vmem:[%s1469 + $0x10] sm:$0xff]
    %v1473 = vld [vmem:[%s1469 + $0x18] sm:$0xff]
    %v1474 = vld [vmem:[%s1469 + $0x20] sm:$0xff]
    %v1475 = vld [vmem:[%s1469 + $0x28] sm:$0xff]
    %v1476 = vld [vmem:[%s1469 + $0x30] sm:$0xff]
    %v1477 = vld [vmem:[%s1469 + $0x38] sm:$0xff]
    %v1478 = vld [vmem:[%s1469 + $0x40] sm:$0xff]
    %v1479 = vld [vmem:[%s1469 + $0x48] sm:$0xff]
    %v1480 = vld [vmem:[%s1469 + $0x50] sm:$0xff]
    %v1481 = vld [vmem:[%s1469 + $0x58] sm:$0xff]
    %v1482 = vld [vmem:[%s1469 + $0x60] sm:$0xff]
    %v1483 = vld [vmem:[%s1469 + $0x68] sm:$0xff]
    %v1484 = vld [vmem:[%s1469 + $0x70] sm:$0xff]
    %v1485 = vld [vmem:[%s1469 + $0x78] sm:$0xff]
    %1486 = vmatprep.subr.mxu0 0.0
    %1487 = vmatpush1.msra.mxu0 %v1485
    %1488 = vmatprep.subr.mxu0 0.0
    %1489 = vmatpush1.msra.mxu0 %v1484
    %1490 = vmatprep.subr.mxu0 0.0
    %1491 = vmatpush1.msra.mxu0 %v1483
    %1492 = vmatprep.subr.mxu0 0.0
    %1493 = vmatpush1.msra.mxu0 %v1482
    %1494 = vmatprep.subr.mxu0 0.0
    %1495 = vmatpush1.msra.mxu0 %v1481
    %1496 = vmatprep.subr.mxu0 0.0
    %1497 = vmatpush1.msra.mxu0 %v1480
    %1498 = vmatprep.subr.mxu0 0.0
    %1499 = vmatpush1.msra.mxu0 %v1479
    %1500 = vmatprep.subr.mxu0 0.0
    %1501 = vmatpush1.msra.mxu0 %v1478
    %1502 = vmatprep.subr.mxu0 0.0
    %1503 = vmatpush1.msra.mxu0 %v1477
    %1504 = vmatprep.subr.mxu0 0.0
    %1505 = vmatpush1.msra.mxu0 %v1476
    %1506 = vmatprep.subr.mxu0 0.0
    %1507 = vmatpush1.msra.mxu0 %v1475
    %1508 = vmatprep.subr.mxu0 0.0
    %1509 = vmatpush1.msra.mxu0 %v1474
    %1510 = vmatprep.subr.mxu0 0.0
    %1511 = vmatpush1.msra.mxu0 %v1473
    %1512 = vmatprep.subr.mxu0 0.0
    %1513 = vmatpush1.msra.mxu0 %v1472
    %1514 = vmatprep.subr.mxu0 0.0
    %1515 = vmatpush1.msra.mxu0 %v1471
    %1516 = vmatprep.subr.mxu0 0.0
    %1517 = vmatpush1.msra.mxu0 %v1470
    %1518 = vmatprep.subr.mxu0 0.0
    %1519 = vmatpush2.msra.mxu0 0.0
    %1520 = vmatprep.subr.mxu0 0.0
    %1521 = vmatpush2.msra.mxu0 0.0
    %1522 = vmatprep.subr.mxu0 0.0
    %1523 = vmatpush2.msra.mxu0 0.0
    %1524 = vmatprep.subr.mxu0 0.0
    %1525 = vmatpush2.msra.mxu0 0.0
    %1526 = vmatprep.subr.mxu0 0.0
    %1527 = vmatpush2.msra.mxu0 0.0
    %1528 = vmatprep.subr.mxu0 0.0
    %1529 = vmatpush2.msra.mxu0 0.0
    %1530 = vmatprep.subr.mxu0 0.0
    %1531 = vmatpush2.msra.mxu0 0.0
    %1532 = vmatprep.subr.mxu0 0.0
    %1533 = vmatpush2.msra.mxu0 0.0
    %1534 = vmatprep.subr.mxu0 0.0
    %1535 = vmatpush2.msra.mxu0 0.0
    %1536 = vmatprep.subr.mxu0 0.0
    %1537 = vmatpush2.msra.mxu0 0.0
    %1538 = vmatprep.subr.mxu0 0.0
    %1539 = vmatpush2.msra.mxu0 0.0
    %1540 = vmatprep.subr.mxu0 0.0
    %1541 = vmatpush2.msra.mxu0 0.0
    %1542 = vmatprep.subr.mxu0 0.0
    %1543 = vmatpush2.msra.mxu0 0.0
    %1544 = vmatprep.subr.mxu0 0.0
    %1545 = vmatpush2.msra.mxu0 0.0
    %1546 = vmatprep.subr.mxu0 0.0
    %1547 = vmatpush2.msra.mxu0 0.0
    %1548 = vmatprep.subr.mxu0 0.0
    %1549 = vmatpush2.msra.mxu0 0.0
    %1550 = vmatprep.mubr.f32.mxu0 0.0
    %1551 = vmatmul.mubr.f32.gmra.mxu0 %v1262
    %v1552 = vpop.f32.mrf.mxu0
    %v1553 = vadd.f32 0.0, %v1552
    %v1554 = vpop.f32.mrf.mxu0
    %1555 = vmatprep.mubr.f32.mxu0 0.0
    %1556 = vmatmul.mubr.f32.gmra.mxu0 %v1263
    %v1557 = vpop.f32.mrf.mxu0
    %v1558 = vadd.f32 0.0, %v1557
    %v1559 = vpop.f32.mrf.mxu0
    %1560 = vmatprep.mubr.f32.mxu0 0.0
    %1561 = vmatmul.mubr.f32.gmra.mxu0 %v1264
    %v1562 = vpop.f32.mrf.mxu0
    %v1563 = vadd.f32 0.0, %v1562
    %v1564 = vpop.f32.mrf.mxu0
    %1565 = vmatprep.mubr.f32.mxu0 0.0
    %1566 = vmatmul.mubr.f32.gmra.mxu0 %v1265
    %v1567 = vpop.f32.mrf.mxu0
    %v1568 = vadd.f32 0.0, %v1567
    %v1569 = vpop.f32.mrf.mxu0
    %1570 = vdwg.mxu0
    %v1571 = vld [vmem:[%s4] sm:$0x1]
    %v1572 = vrot.slane %v1349, 7
    %v1573 = vrot.slane %v1354, 7
    %v1574 = vrot.slane %v1359, 7
    %v1575 = vrot.slane %v1364, 7
    %v1576 = vsel %vm1226, %v1574, %v1575
    %v1577 = vsel %vm1226, %v1573, %v1574
    %v1578 = vsel %vm1226, %v1572, %v1573
    %v1579 = vsel %vm1226, %v1575, %v1572
    %v1580 = vmul.f32 %v1579, %v85
    %v1581 = vmul.f32 %v1578, %v86
    %v1582 = vmul.f32 %v1577, %v85
    %v1583 = vmul.f32 %v1576, %v86
    %v1584 = vadd.f32 %v1580, %v1451
    %v1585 = vadd.f32 %v1581, %v1456
    %v1586 = vadd.f32 %v1582, %v1461
    %v1587 = vadd.f32 %v1583, %v1466
    %v1588 = vrot.slane %v1553, 1
    %v1589 = vrot.slane %v1558, 1
    %v1590 = vrot.slane %v1563, 1
    %v1591 = vrot.slane %v1568, 1
    %v1592 = vsel %vm1243, %v1590, %v1591
    %v1593 = vsel %vm1243, %v1589, %v1590
    %v1594 = vsel %vm1243, %v1588, %v1589
    %v1595 = vsel %vm1243, %v1591, %v1588
    %v1596 = vmul.f32 %v1594, %v91
    %v1597 = vmul.f32 %v1593, %v92
    %v1598 = vmul.f32 %v1592, %v91
    %v1599 = vmul.f32 %v1595, %v92
    %v1600 = vadd.f32 %v1584, %v1596
    %v1601 = vadd.f32 %v1585, %v1597
    %v1602 = vadd.f32 %v1586, %v1598
    %v1603 = vadd.f32 %v1587, %v1599
    %v1605 = vlaneseq
    %v1606 = vshrl.u32 %v1605, 7
    %v1607 = vsub.s32 0, %v1606
    %v1608 = vrot.slane %v1571, %v1607
    %v1610 = vadd.f32 %v1600, %v1608
    %v1611 = vadd.f32 %v1601, %v1608
    %v1612 = vadd.f32 %v1602, %v1608
    %v1613 = vadd.f32 %v1603, %v1608
    %1614 = vst.msk [vmem:[#allocation8] sm:$0xff] %vm98, %v1610
    %1615 = vst.msk [vmem:[#allocation8 + $0x8] sm:$0xff] %vm98, %v1611
    %1616 = vst.msk [vmem:[#allocation8 + $0x80] sm:$0xff] %vm98, %v1612
    %1617 = vst.msk [vmem:[#allocation8 + $0x88] sm:$0xff] %vm98, %v1613
    %1622 = vrot.lane.b32.xlu0 %v1610, 112
    %v1623 = vpop.permute.xlu0 %1622
    %1624 = vrot.lane.b32.xlu0 %v1611, 112
    %v1625 = vpop.permute.xlu0 %1624
    %1626 = vrot.lane.b32.xlu0 %v1612, 112
    %v1627 = vpop.permute.xlu0 %1626
    %1628 = vrot.lane.b32.xlu0 %v1613, 112
    %v1629 = vpop.permute.xlu0 %1628
    %s1634 = scalar_lea.vmem [#allocation8], 16
    %1635 = vst.msk [vmem:[%s1634] sm:$0xff] %vm98, %v1623
    %1636 = vst.msk [vmem:[%s1634 + $0x8] sm:$0xff] %vm98, %v1625
    %1637 = vst.msk [vmem:[%s1634 + $0x80] sm:$0xff] %vm98, %v1627
    %1638 = vst.msk [vmem:[%s1634 + $0x88] sm:$0xff] %vm98, %v1629
    %1639 = vrot.lane.b32.xlu0 %v1610, 96
    %v1640 = vpop.permute.xlu0 %1639
    %1641 = vrot.lane.b32.xlu0 %v1611, 96
    %v1642 = vpop.permute.xlu0 %1641
    %1643 = vrot.lane.b32.xlu0 %v1612, 96
    %v1644 = vpop.permute.xlu0 %1643
    %1645 = vrot.lane.b32.xlu0 %v1613, 96
    %v1646 = vpop.permute.xlu0 %1645
    %s1651 = scalar_lea.vmem [#allocation8], 32
    %1652 = vst.msk [vmem:[%s1651] sm:$0xff] %vm98, %v1640
    %1653 = vst.msk [vmem:[%s1651 + $0x8] sm:$0xff] %vm98, %v1642
    %1654 = vst.msk [vmem:[%s1651 + $0x80] sm:$0xff] %vm98, %v1644
    %1655 = vst.msk [vmem:[%s1651 + $0x88] sm:$0xff] %vm98, %v1646
    %1656 = vrot.lane.b32.xlu0 %v1610, 80
    %v1657 = vpop.permute.xlu0 %1656
    %1658 = vrot.lane.b32.xlu0 %v1611, 80
    %v1659 = vpop.permute.xlu0 %1658
    %1660 = vrot.lane.b32.xlu0 %v1612, 80
    %v1661 = vpop.permute.xlu0 %1660
    %1662 = vrot.lane.b32.xlu0 %v1613, 80
    %v1663 = vpop.permute.xlu0 %1662
    %s1668 = scalar_lea.vmem [#allocation8], 48
    %1669 = vst.msk [vmem:[%s1668] sm:$0xff] %vm98, %v1657
    %1670 = vst.msk [vmem:[%s1668 + $0x8] sm:$0xff] %vm98, %v1659
    %1671 = vst.msk [vmem:[%s1668 + $0x80] sm:$0xff] %vm98, %v1661
    %1672 = vst.msk [vmem:[%s1668 + $0x88] sm:$0xff] %vm98, %v1663
    %1673 = vrot.lane.b32.xlu0 %v1610, 64
    %v1674 = vpop.permute.xlu0 %1673
    %1675 = vrot.lane.b32.xlu0 %v1611, 64
    %v1676 = vpop.permute.xlu0 %1675
    %1677 = vrot.lane.b32.xlu0 %v1612, 64
    %v1678 = vpop.permute.xlu0 %1677
    %1679 = vrot.lane.b32.xlu0 %v1613, 64
    %v1680 = vpop.permute.xlu0 %1679
    %s1685 = scalar_lea.vmem [#allocation8], 64
    %1686 = vst.msk [vmem:[%s1685] sm:$0xff] %vm98, %v1674
    %1687 = vst.msk [vmem:[%s1685 + $0x8] sm:$0xff] %vm98, %v1676
    %1688 = vst.msk [vmem:[%s1685 + $0x80] sm:$0xff] %vm98, %v1678
    %1689 = vst.msk [vmem:[%s1685 + $0x88] sm:$0xff] %vm98, %v1680
    %1690 = vrot.lane.b32.xlu0 %v1610, 48
    %v1691 = vpop.permute.xlu0 %1690
    %1692 = vrot.lane.b32.xlu0 %v1611, 48
    %v1693 = vpop.permute.xlu0 %1692
    %1694 = vrot.lane.b32.xlu0 %v1612, 48
    %v1695 = vpop.permute.xlu0 %1694
    %1696 = vrot.lane.b32.xlu0 %v1613, 48
    %v1697 = vpop.permute.xlu0 %1696
    %s1702 = scalar_lea.vmem [#allocation8], 80
    %1703 = vst.msk [vmem:[%s1702] sm:$0xff] %vm98, %v1691
    %1704 = vst.msk [vmem:[%s1702 + $0x8] sm:$0xff] %vm98, %v1693
    %1705 = vst.msk [vmem:[%s1702 + $0x80] sm:$0xff] %vm98, %v1695
    %1706 = vst.msk [vmem:[%s1702 + $0x88] sm:$0xff] %vm98, %v1697
    %1707 = vrot.lane.b32.xlu0 %v1610, 32
    %v1708 = vpop.permute.xlu0 %1707
    %1709 = vrot.lane.b32.xlu0 %v1611, 32
    %v1710 = vpop.permute.xlu0 %1709
    %1711 = vrot.lane.b32.xlu0 %v1612, 32
    %v1712 = vpop.permute.xlu0 %1711
    %1713 = vrot.lane.b32.xlu0 %v1613, 32
    %v1714 = vpop.permute.xlu0 %1713
    %s1719 = scalar_lea.vmem [#allocation8], 96
    %1720 = vst.msk [vmem:[%s1719] sm:$0xff] %vm98, %v1708
    %1721 = vst.msk [vmem:[%s1719 + $0x8] sm:$0xff] %vm98, %v1710
    %1722 = vst.msk [vmem:[%s1719 + $0x80] sm:$0xff] %vm98, %v1712
    %1723 = vst.msk [vmem:[%s1719 + $0x88] sm:$0xff] %vm98, %v1714
    %1724 = vrot.lane.b32.xlu0 %v1610, 16
    %v1725 = vpop.permute.xlu0 %1724
    %1726 = vrot.lane.b32.xlu0 %v1611, 16
    %v1727 = vpop.permute.xlu0 %1726
    %1728 = vrot.lane.b32.xlu0 %v1612, 16
    %v1729 = vpop.permute.xlu0 %1728
    %1730 = vrot.lane.b32.xlu0 %v1613, 16
    %v1731 = vpop.permute.xlu0 %1730
    %s1736 = scalar_lea.vmem [#allocation8], 112
    %1737 = vst.msk [vmem:[%s1736] sm:$0xff] %vm98, %v1725
    %1738 = vst.msk [vmem:[%s1736 + $0x8] sm:$0xff] %vm98, %v1727
    %1739 = vst.msk [vmem:[%s1736 + $0x80] sm:$0xff] %vm98, %v1729
    %1740 = vst.msk [vmem:[%s1736 + $0x88] sm:$0xff] %vm98, %v1731
    // Predicated region
    $region34: #{tpu_custom_call.1} parent=1 // pred_check
      _
    $region35: #{tpu_custom_call.1} parent=1 // pred_check_branch
      %1742 = sbr.rel (0) target = $region37
    $region36: #{tpu_custom_call.1} parent=1 // pred_region
      %s1744 = ssub.s32 4096, 4096
      %1745 = vsyncadd [#allocation4], %s1744
      %s1746 = sshll.u32 [#allocation8], 4
      %s1747 = int_to_ptr.vmem [resolvable:$true] %s1746
      %1752 = dma.vmem_to_hbm [thread:$0]  %s1747, 4096, %s5, [#allocation4], 128, 128, 8
    $region37: #{tpu_custom_call.1} parent=1 // pred_fallthru
      _
    // Predicated region
    $region38: #{tpu_custom_call.1} parent=1 // pred_check
      _
    $region39: #{tpu_custom_call.1} parent=1 // pred_check_branch
      %1754 = sbr.rel (0) target = $region41
    $region40: #{tpu_custom_call.1} parent=1 // pred_region
      %1755 = dma.done [#allocation4], 4096
    $region41: #{tpu_custom_call.1} parent=1 // pred_fallthru
      _
    %1756 = vsyncpa [#allocation3], 1
    %1757 = vsyncpa [#allocation6], 1
    %1758 = vsyncpa [#allocation4], 1

</llo_original>
